<compile_context>
chip_gen: v6e
topology: v6e:2x2x1
jax: 0.10.0
libtpu: 0.0.40
codegen_flags: <defaults>
</compile_context>

<pallas_src>
import functools

import jax
import jax.numpy as jnp
from jax.experimental import pallas as pl
from jax.experimental.pallas import tpu as pltpu


# ---------------------------------------------------------------------------
# Fused Pallas kernel: the entire QNNS forward for one grid step.
# Layout inside the kernel: feature map = (C, L) f32, lane dim L = NB*H*W.
# ---------------------------------------------------------------------------
def _qnns_kernel(x_ref, m_ref,
                 wA_ref,    # stacked [conv1_0 | conv3_0 | conv4_0 | conv6_0]
                 wB_ref,    # stacked [conv2_0a | conv1_1]
                 w2b_ref,   # conv2_0b (5x5)
                 w41_ref,   # conv4_1  (3x3)
                 w50_ref,   # conv5_0  (3x3)
                 wf_ref,    # final 1x1 over 6*C channels, no relu
                 o_ref, *, W, C):
    L = x_ref.shape[2]
    x = x_ref[0]                                    # (C, L)

    def mask_row(dy, dx):
        # (1, L) f32 validity mask for tap (dy, dx); precomputed in wrapper,
        # periodic in H*W so folded-image boundaries are masked like borders.
        return m_ref[pl.ds((dy + 2) * 5 + (dx + 2), 1), :]

    ones_row = mask_row(0, 0)                       # center tap: all ones

    def shifted(f, dy, dx):
        # out[:, p] = f[:, p + dy*W + dx] if that pixel is inside the same
        # image, else 0.  pltpu.roll(a, s)[i] = a[i - s]  =>  shift = -off.
        if dy == 0 and dx == 0:
            return f
        off = dy * W + dx
        r = pltpu.roll(f, shift=(-off) % L, axis=1)
        return r * mask_row(dy, dx)

    def patches(f, ksize):
        # im2col patch matrix (ksize*ksize*Cin + 1, L); the trailing ones row
        # folds the bias into the MXU contraction.
        r = ksize // 2
        rows = [shifted(f, dy, dx)
                for dy in range(-r, r + 1) for dx in range(-r, r + 1)]
        rows.append(ones_row)
        return jnp.concatenate(rows, axis=0)

    def mm(w_ref, p, relu=True):
        out = jnp.dot(w_ref[...], p, preferred_element_type=jnp.float32)
        return jnp.maximum(out, 0.0) if relu else out

    def maxpool3(f):
        # f is post-ReLU (>= 0) and the (always valid) center tap is included,
        # so zero fill is exact -- no -inf constant, same tap path as convs.
        res = f
        for dy in (-1, 0, 1):
            for dx in (-1, 0, 1):
                if dy or dx:
                    res = jnp.maximum(res, shifted(f, dy, dx))
        return res

    # --- stage A: every conv that reads x, as ONE stacked matmul -----------
    a = mm(wA_ref, patches(x, 3))                   # (4*C, L)
    temp1, temp2 = a[0:C], a[C:2 * C]               # conv1_0, conv3_0
    temp3, index6 = a[2 * C:3 * C], a[3 * C:4 * C]  # conv4_0, conv6_0

    # --- stage B: every conv that reads temp1, as ONE stacked matmul -------
    b = mm(wB_ref, patches(temp1, 3))               # (2*C, L)
    t20a = b[0:C]                                   # conv2_0 first 3x3
    index1 = maxpool3(b[C:2 * C])                   # conv1_1 -> maxpool3

    index2 = mm(w2b_ref, patches(t20a, 5)) + temp2  # conv2_0 5x5 + temp2
    index3 = maxpool3(temp2)
    index4 = mm(w41_ref, patches(temp2 + temp3, 3))
    index5 = mm(w50_ref, patches(temp3, 3))

    cat = jnp.concatenate(
        [index1, index2, index3, index4, index5, index6, ones_row], axis=0)
    o_ref[0] = mm(wf_ref, cat, relu=False)          # lane-dense (C, L) store


# ---------------------------------------------------------------------------
# Weight packing (bias folded as an extra column; 1x1 convs embedded as
# center-tap-only 3x3 weights so they ride the shared patch matrix).
# Weights stored as (KH, KW, Cin, Cout), bias (Cout,).
# ---------------------------------------------------------------------------
def _pack(w, b):
    kh, kw, cin, cout = w.shape
    wm = w.reshape(kh * kw * cin, cout).T           # col = (ky*KW+kx)*Cin + ci
    return jnp.concatenate([wm, b.reshape(cout, 1)], axis=1)


def _embed_1x1(w):
    _, _, cin, cout = w.shape
    return jnp.zeros((3, 3, cin, cout), w.dtype).at[1, 1].set(w[0, 0])


def _pack_params(p):
    wA = jnp.concatenate(
        [_pack(*p["conv1_0"]),
         _pack(*p["conv3_0"]),
         _pack(_embed_1x1(p["conv4_0"][0]), p["conv4_0"][1]),
         _pack(_embed_1x1(p["conv6_0"][0]), p["conv6_0"][1])], axis=0)
    wB = jnp.concatenate(
        [_pack(*p["conv2_0a"]),
         _pack(_embed_1x1(p["conv1_1"][0]), p["conv1_1"][1])], axis=0)
    return [wA, wB, _pack(*p["conv2_0b"]), _pack(*p["conv4_1"]),
            _pack(*p["conv5_0"]), _pack(*p["conv"])]


def _make_masks(H, W, nb):
    hw = H * W
    pos = jnp.arange(nb * hw, dtype=jnp.int32) % hw   # periodic in H*W
    yy, xx = pos // W, pos % W
    rows = []
    for dy in range(-2, 3):
        for dx in range(-2, 3):
            m = ((yy + dy >= 0) & (yy + dy < H) & (xx + dx >= 0) & (xx + dx < W))
            rows.append(m.astype(jnp.float32))
    return jnp.stack(rows, axis=0)                   # (25, nb*H*W)


# ---------------------------------------------------------------------------
# Wrapper
# ---------------------------------------------------------------------------
def qnns_forward(params, x_nchw, images_per_step=None):
    N, C, H, W = x_nchw.shape
    HW = H * W
    if images_per_step is None:
        # Keep >= 2 grid steps so both v7x TensorCores get work, fold the rest
        # of the batch into the lane axis (v5e/v6e single-TC win, wider MXU).
        images_per_step = next(
            (nb for nb in range(N // 2, 0, -1) if N % nb == 0), 1)
    NB = images_per_step
    assert N % NB == 0
    G = N // NB
    L = NB * HW

    if NB == 1:
        x2 = x_nchw.reshape(G, C, L)
    else:  # lane index = nb*H*W + y*W + x   (layout plumbing in the wrapper)
        x2 = (x_nchw.reshape(G, NB, C, HW)
              .transpose(0, 2, 1, 3).reshape(G, C, L))

    masks = _make_masks(H, W, NB)
    weights = _pack_params(params)

    def const_spec(a):
        # full-array block, constant index map -> DMA'd once, VMEM-resident.
        return pl.BlockSpec(a.shape, lambda g: (0,) * a.ndim)

    kern = functools.partial(_qnns_kernel, W=W, C=C)
    out = pl.pallas_call(
        kern,
        out_shape=jax.ShapeDtypeStruct((G, C, L), jnp.float32),
        grid=(G,),
        in_specs=[pl.BlockSpec((1, C, L), lambda g: (g, 0, 0)),
                  const_spec(masks)] + [const_spec(w) for w in weights],
        out_specs=pl.BlockSpec((1, C, L), lambda g: (g, 0, 0)),
        compiler_params=pltpu.CompilerParams(
            dimension_semantics=("parallel",)),
    )(x2, masks, *weights)

    if NB == 1:
        return out.reshape(N, C, H, W)
    return (out.reshape(G, C, NB, HW)
            .transpose(0, 2, 1, 3).reshape(N, C, H, W))


# ---------------------------------------------------------------------------
# Parameters (deterministic, PyTorch-like uniform(-1/sqrt(fan_in), +))
# ---------------------------------------------------------------------------
def init_params(key, n_feat):
    layers = {
        "conv1_0": (3, n_feat, n_feat),
        "conv1_1": (1, n_feat, n_feat),
        "conv2_0a": (3, n_feat, n_feat),
        "conv2_0b": (5, n_feat, n_feat),
        "conv3_0": (3, n_feat, n_feat),
        "conv4_0": (1, n_feat, n_feat),
        "conv4_1": (3, n_feat, n_feat),
        "conv5_0": (3, n_feat, n_feat),
        "conv6_0": (1, n_feat, n_feat),
        "conv": (1, 6 * n_feat, n_feat),
    }
    params = {}
    for name, (k, cin, cout) in layers.items():
        key, kw, kb = jax.random.split(key, 3)
        scale = 1.0 / float(k * k * cin) ** 0.5
        params[name] = (
            jax.random.uniform(kw, (k, k, cin, cout), jnp.float32, -scale, scale),
            jax.random.uniform(kb, (cout,), jnp.float32, -scale, scale),
        )
    return params


# ---------------------------------------------------------------------------
# Pure-XLA reference (for in-script correctness check)
# ---------------------------------------------------------------------------
def _conv_ref(x, w, b, relu=True):
    out = jax.lax.conv_general_dilated(
        x, w, window_strides=(1, 1), padding="SAME",
        dimension_numbers=("NCHW", "HWIO", "NCHW"))
    out = out + b[None, :, None, None]
    return jnp.maximum(out, 0.0) if relu else out


def _maxpool3_ref(x):
    return jax.lax.reduce_window(
        x, -jnp.inf, jax.lax.max, (1, 1, 3, 3), (1, 1, 1, 1),
        ((0, 0), (0, 0), (1, 1), (1, 1)))


def qnns_reference(params, x):
    w, b = params["conv1_0"]; temp1 = _conv_ref(x, w, b)
    w, b = params["conv1_1"]; index1 = _maxpool3_ref(_conv_ref(temp1, w, b))
    w, b = params["conv3_0"]; temp2 = _conv_ref(x, w, b)
    w, b = params["conv2_0a"]; t = _conv_ref(temp1, w, b)
    w, b = params["conv2_0b"]; index2 = _conv_ref(t, w, b) + temp2
    index3 = _maxpool3_ref(temp2)
    w, b = params["conv4_0"]; temp3 = _conv_ref(x, w, b)
    w, b = params["conv4_1"]; index4 = _conv_ref(temp2 + temp3, w, b)
    w, b = params["conv5_0"]; index5 = _conv_ref(temp3, w, b)
    w, b = params["conv6_0"]; index6 = _conv_ref(x, w, b)
    cat = jnp.concatenate([index1, index2, index3, index4, index5, index6], axis=1)
    w, b = params["conv"]
    return _conv_ref(cat, w, b, relu=False)


# ---------------------------------------------------------------------------
if __name__ == "__main__":
    key = jax.random.PRNGKey(0)
    kx, kp = jax.random.split(key)

    N, C, H, W = 2, 8, 16, 16          # batch=2, n_feat=8, 16x16 spatial
    x = jax.random.normal(kx, (N, C, H, W), jnp.float32)
    params = init_params(kp, C)

    out = jax.jit(qnns_forward)(params, x)
    jax.block_until_ready(out)
    assert out.shape == (N, C, H, W) and out.dtype == jnp.float32

    ref = jax.jit(qnns_reference)(params, x)
    # Scale-aware tolerance: loose enough for default (bf16-pass) f32 matmul
    # precision on both paths, tight enough to catch any weight-packing /
    # tap-ordering regression (which produces O(1) relative errors).
    scale = float(jnp.max(jnp.abs(ref)))
    err = float(jnp.max(jnp.abs(out - ref)))
    assert err <= 2e-2 * max(1.0, scale), \
        f"mismatch vs XLA reference: max|diff|={err}, max|ref|={scale}"

    print("KERNEL_OK")
</pallas_src>

<mosaic_0001>
module attributes {stable_mosaic.version = 11 : i64} {
  func.func @_qnns_kernel(%arg0: i32, %arg1: memref<1x8x256xf32, #tpu.memory_space<vmem>>, %arg2: memref<25x256xf32, #tpu.memory_space<vmem>>, %arg3: memref<32x73xf32, #tpu.memory_space<vmem>>, %arg4: memref<16x73xf32, #tpu.memory_space<vmem>>, %arg5: memref<8x201xf32, #tpu.memory_space<vmem>>, %arg6: memref<8x73xf32, #tpu.memory_space<vmem>>, %arg7: memref<8x73xf32, #tpu.memory_space<vmem>>, %arg8: memref<8x49xf32, #tpu.memory_space<vmem>>, %arg9: memref<1x8x256xf32, #tpu.memory_space<vmem>>) attributes {dimension_semantics = [#tpu.dimension_semantics<parallel>], iteration_bounds = array<i64: 2>, scalar_prefetch = 0 : i64, scratch_operands = 0 : i64, tpu.core_type = #tpu.core_type<tc>, window_params = [{transform_indices = @transform_0, window_bounds = array<i64: 1, 8, 256>}, {pipeline_mode = #tpu.pipeline_mode<synchronous>, transform_indices = @transform_1, window_bounds = array<i64: 25, 256>}, {pipeline_mode = #tpu.pipeline_mode<synchronous>, transform_indices = @transform_2, window_bounds = array<i64: 32, 73>}, {pipeline_mode = #tpu.pipeline_mode<synchronous>, transform_indices = @transform_3, window_bounds = array<i64: 16, 73>}, {pipeline_mode = #tpu.pipeline_mode<synchronous>, transform_indices = @transform_4, window_bounds = array<i64: 8, 201>}, {pipeline_mode = #tpu.pipeline_mode<synchronous>, transform_indices = @transform_5, window_bounds = array<i64: 8, 73>}, {pipeline_mode = #tpu.pipeline_mode<synchronous>, transform_indices = @transform_6, window_bounds = array<i64: 8, 73>}, {pipeline_mode = #tpu.pipeline_mode<synchronous>, transform_indices = @transform_7, window_bounds = array<i64: 8, 49>}, {transform_indices = @transform_8, window_bounds = array<i64: 1, 8, 256>}]} {
    %c0 = arith.constant 0 : index
    %c0_0 = arith.constant 0 : index
    %c0_1 = arith.constant 0 : index
    %0 = vector.load %arg1[%c0, %c0_0, %c0_1] : memref<1x8x256xf32, #tpu.memory_space<vmem>>, vector<1x8x256xf32>
    %1 = vector.shape_cast %0 : vector<1x8x256xf32> to vector<8x256xf32>
    %c12 = arith.constant 12 : index
    %c0_2 = arith.constant 0 : index
    %2 = vector.load %arg2[%c12, %c0_2] : memref<25x256xf32, #tpu.memory_space<vmem>>, vector<1x256xf32>
    %c17_i32 = arith.constant 17 : i32
    %3 = tpu.dynamic_rotate %1 by %c17_i32 dim 1 : vector<8x256xf32>, i32 -> vector<8x256xf32>
    %c6 = arith.constant 6 : index
    %c0_3 = arith.constant 0 : index
    %4 = vector.load %arg2[%c6, %c0_3] : memref<25x256xf32, #tpu.memory_space<vmem>>, vector<1x256xf32>
    %5 = vector.broadcast %4 : vector<1x256xf32> to vector<8x256xf32>
    %6 = arith.mulf %3, %5 : vector<8x256xf32>
    %c16_i32 = arith.constant 16 : i32
    %7 = tpu.dynamic_rotate %1 by %c16_i32 dim 1 : vector<8x256xf32>, i32 -> vector<8x256xf32>
    %c7 = arith.constant 7 : index
    %c0_4 = arith.constant 0 : index
    %8 = vector.load %arg2[%c7, %c0_4] : memref<25x256xf32, #tpu.memory_space<vmem>>, vector<1x256xf32>
    %9 = vector.broadcast %8 : vector<1x256xf32> to vector<8x256xf32>
    %10 = arith.mulf %7, %9 : vector<8x256xf32>
    %c15_i32 = arith.constant 15 : i32
    %11 = tpu.dynamic_rotate %1 by %c15_i32 dim 1 : vector<8x256xf32>, i32 -> vector<8x256xf32>
    %c8 = arith.constant 8 : index
    %c0_5 = arith.constant 0 : index
    %12 = vector.load %arg2[%c8, %c0_5] : memref<25x256xf32, #tpu.memory_space<vmem>>, vector<1x256xf32>
    %13 = vector.broadcast %12 : vector<1x256xf32> to vector<8x256xf32>
    %14 = arith.mulf %11, %13 : vector<8x256xf32>
    %c1_i32 = arith.constant 1 : i32
    %15 = tpu.dynamic_rotate %1 by %c1_i32 dim 1 : vector<8x256xf32>, i32 -> vector<8x256xf32>
    %c11 = arith.constant 11 : index
    %c0_6 = arith.constant 0 : index
    %16 = vector.load %arg2[%c11, %c0_6] : memref<25x256xf32, #tpu.memory_space<vmem>>, vector<1x256xf32>
    %17 = vector.broadcast %16 : vector<1x256xf32> to vector<8x256xf32>
    %18 = arith.mulf %15, %17 : vector<8x256xf32>
    %c255_i32 = arith.constant 255 : i32
    %19 = tpu.dynamic_rotate %1 by %c255_i32 dim 1 : vector<8x256xf32>, i32 -> vector<8x256xf32>
    %c13 = arith.constant 13 : index
    %c0_7 = arith.constant 0 : index
    %20 = vector.load %arg2[%c13, %c0_7] : memref<25x256xf32, #tpu.memory_space<vmem>>, vector<1x256xf32>
    %21 = vector.broadcast %20 : vector<1x256xf32> to vector<8x256xf32>
    %22 = arith.mulf %19, %21 : vector<8x256xf32>
    %c241_i32 = arith.constant 241 : i32
    %23 = tpu.dynamic_rotate %1 by %c241_i32 dim 1 : vector<8x256xf32>, i32 -> vector<8x256xf32>
    %c16 = arith.constant 16 : index
    %c0_8 = arith.constant 0 : index
    %24 = vector.load %arg2[%c16, %c0_8] : memref<25x256xf32, #tpu.memory_space<vmem>>, vector<1x256xf32>
    %25 = vector.broadcast %24 : vector<1x256xf32> to vector<8x256xf32>
    %26 = arith.mulf %23, %25 : vector<8x256xf32>
    %c240_i32 = arith.constant 240 : i32
    %27 = tpu.dynamic_rotate %1 by %c240_i32 dim 1 : vector<8x256xf32>, i32 -> vector<8x256xf32>
    %c17 = arith.constant 17 : index
    %c0_9 = arith.constant 0 : index
    %28 = vector.load %arg2[%c17, %c0_9] : memref<25x256xf32, #tpu.memory_space<vmem>>, vector<1x256xf32>
    %29 = vector.broadcast %28 : vector<1x256xf32> to vector<8x256xf32>
    %30 = arith.mulf %27, %29 : vector<8x256xf32>
    %c239_i32 = arith.constant 239 : i32
    %31 = tpu.dynamic_rotate %1 by %c239_i32 dim 1 : vector<8x256xf32>, i32 -> vector<8x256xf32>
    %c18 = arith.constant 18 : index
    %c0_10 = arith.constant 0 : index
    %32 = vector.load %arg2[%c18, %c0_10] : memref<25x256xf32, #tpu.memory_space<vmem>>, vector<1x256xf32>
    %33 = vector.broadcast %32 : vector<1x256xf32> to vector<8x256xf32>
    %34 = arith.mulf %31, %33 : vector<8x256xf32>
    %35 = tpu.concatenate %6, %10, %14, %18, %1, %22, %26, %30, %34, %2 in 0 : vector<8x256xf32>, vector<8x256xf32>, vector<8x256xf32>, vector<8x256xf32>, vector<8x256xf32>, vector<8x256xf32>, vector<8x256xf32>, vector<8x256xf32>, vector<8x256xf32>, vector<1x256xf32> -> vector<73x256xf32>
    %c0_11 = arith.constant 0 : index
    %c0_12 = arith.constant 0 : index
    %36 = vector.load %arg3[%c0_11, %c0_12] : memref<32x73xf32, #tpu.memory_space<vmem>>, vector<32x73xf32>
    %cst = arith.constant dense<0.000000e+00> : vector<32x256xf32>
    %37 = tpu.matmul %36, %35, %cst {dimension_numbers = #tpu.dot_dimension_numbers<[1], [0], [0], [1], [0, 0, 1, 1], [], []>} : vector<32x73xf32>, vector<73x256xf32>, vector<32x256xf32> -> vector<32x256xf32>
    %cst_13 = arith.constant 0.000000e+00 : f32
    %38 = vector.broadcast %cst_13 : f32 to vector<32x256xf32>
    %39 = arith.maximumf %37, %38 : vector<32x256xf32>
    %40 = vector.extract_strided_slice %39 {offsets = [0, 0], sizes = [8, 256], strides = [1, 1]} : vector<32x256xf32> to vector<8x256xf32>
    %41 = vector.extract_strided_slice %39 {offsets = [8, 0], sizes = [8, 256], strides = [1, 1]} : vector<32x256xf32> to vector<8x256xf32>
    %42 = vector.extract_strided_slice %39 {offsets = [16, 0], sizes = [8, 256], strides = [1, 1]} : vector<32x256xf32> to vector<8x256xf32>
    %43 = vector.extract_strided_slice %39 {offsets = [24, 0], sizes = [8, 256], strides = [1, 1]} : vector<32x256xf32> to vector<8x256xf32>
    %c17_i32_14 = arith.constant 17 : i32
    %44 = tpu.dynamic_rotate %40 by %c17_i32_14 dim 1 : vector<8x256xf32>, i32 -> vector<8x256xf32>
    %c6_15 = arith.constant 6 : index
    %c0_16 = arith.constant 0 : index
    %45 = vector.load %arg2[%c6_15, %c0_16] : memref<25x256xf32, #tpu.memory_space<vmem>>, vector<1x256xf32>
    %46 = vector.broadcast %45 : vector<1x256xf32> to vector<8x256xf32>
    %47 = arith.mulf %44, %46 : vector<8x256xf32>
    %c16_i32_17 = arith.constant 16 : i32
    %48 = tpu.dynamic_rotate %40 by %c16_i32_17 dim 1 : vector<8x256xf32>, i32 -> vector<8x256xf32>
    %c7_18 = arith.constant 7 : index
    %c0_19 = arith.constant 0 : index
    %49 = vector.load %arg2[%c7_18, %c0_19] : memref<25x256xf32, #tpu.memory_space<vmem>>, vector<1x256xf32>
    %50 = vector.broadcast %49 : vector<1x256xf32> to vector<8x256xf32>
    %51 = arith.mulf %48, %50 : vector<8x256xf32>
    %c15_i32_20 = arith.constant 15 : i32
    %52 = tpu.dynamic_rotate %40 by %c15_i32_20 dim 1 : vector<8x256xf32>, i32 -> vector<8x256xf32>
    %c8_21 = arith.constant 8 : index
    %c0_22 = arith.constant 0 : index
    %53 = vector.load %arg2[%c8_21, %c0_22] : memref<25x256xf32, #tpu.memory_space<vmem>>, vector<1x256xf32>
    %54 = vector.broadcast %53 : vector<1x256xf32> to vector<8x256xf32>
    %55 = arith.mulf %52, %54 : vector<8x256xf32>
    %c1_i32_23 = arith.constant 1 : i32
    %56 = tpu.dynamic_rotate %40 by %c1_i32_23 dim 1 : vector<8x256xf32>, i32 -> vector<8x256xf32>
    %c11_24 = arith.constant 11 : index
    %c0_25 = arith.constant 0 : index
    %57 = vector.load %arg2[%c11_24, %c0_25] : memref<25x256xf32, #tpu.memory_space<vmem>>, vector<1x256xf32>
    %58 = vector.broadcast %57 : vector<1x256xf32> to vector<8x256xf32>
    %59 = arith.mulf %56, %58 : vector<8x256xf32>
    %c255_i32_26 = arith.constant 255 : i32
    %60 = tpu.dynamic_rotate %40 by %c255_i32_26 dim 1 : vector<8x256xf32>, i32 -> vector<8x256xf32>
    %c13_27 = arith.constant 13 : index
    %c0_28 = arith.constant 0 : index
    %61 = vector.load %arg2[%c13_27, %c0_28] : memref<25x256xf32, #tpu.memory_space<vmem>>, vector<1x256xf32>
    %62 = vector.broadcast %61 : vector<1x256xf32> to vector<8x256xf32>
    %63 = arith.mulf %60, %62 : vector<8x256xf32>
    %c241_i32_29 = arith.constant 241 : i32
    %64 = tpu.dynamic_rotate %40 by %c241_i32_29 dim 1 : vector<8x256xf32>, i32 -> vector<8x256xf32>
    %c16_30 = arith.constant 16 : index
    %c0_31 = arith.constant 0 : index
    %65 = vector.load %arg2[%c16_30, %c0_31] : memref<25x256xf32, #tpu.memory_space<vmem>>, vector<1x256xf32>
    %66 = vector.broadcast %65 : vector<1x256xf32> to vector<8x256xf32>
    %67 = arith.mulf %64, %66 : vector<8x256xf32>
    %c240_i32_32 = arith.constant 240 : i32
    %68 = tpu.dynamic_rotate %40 by %c240_i32_32 dim 1 : vector<8x256xf32>, i32 -> vector<8x256xf32>
    %c17_33 = arith.constant 17 : index
    %c0_34 = arith.constant 0 : index
    %69 = vector.load %arg2[%c17_33, %c0_34] : memref<25x256xf32, #tpu.memory_space<vmem>>, vector<1x256xf32>
    %70 = vector.broadcast %69 : vector<1x256xf32> to vector<8x256xf32>
    %71 = arith.mulf %68, %70 : vector<8x256xf32>
    %c239_i32_35 = arith.constant 239 : i32
    %72 = tpu.dynamic_rotate %40 by %c239_i32_35 dim 1 : vector<8x256xf32>, i32 -> vector<8x256xf32>
    %c18_36 = arith.constant 18 : index
    %c0_37 = arith.constant 0 : index
    %73 = vector.load %arg2[%c18_36, %c0_37] : memref<25x256xf32, #tpu.memory_space<vmem>>, vector<1x256xf32>
    %74 = vector.broadcast %73 : vector<1x256xf32> to vector<8x256xf32>
    %75 = arith.mulf %72, %74 : vector<8x256xf32>
    %76 = tpu.concatenate %47, %51, %55, %59, %40, %63, %67, %71, %75, %2 in 0 : vector<8x256xf32>, vector<8x256xf32>, vector<8x256xf32>, vector<8x256xf32>, vector<8x256xf32>, vector<8x256xf32>, vector<8x256xf32>, vector<8x256xf32>, vector<8x256xf32>, vector<1x256xf32> -> vector<73x256xf32>
    %c0_38 = arith.constant 0 : index
    %c0_39 = arith.constant 0 : index
    %77 = vector.load %arg4[%c0_38, %c0_39] : memref<16x73xf32, #tpu.memory_space<vmem>>, vector<16x73xf32>
    %cst_40 = arith.constant dense<0.000000e+00> : vector<16x256xf32>
    %78 = tpu.matmul %77, %76, %cst_40 {dimension_numbers = #tpu.dot_dimension_numbers<[1], [0], [0], [1], [0, 0, 1, 1], [], []>} : vector<16x73xf32>, vector<73x256xf32>, vector<16x256xf32> -> vector<16x256xf32>
    %cst_41 = arith.constant 0.000000e+00 : f32
    %79 = vector.broadcast %cst_41 : f32 to vector<16x256xf32>
    %80 = arith.maximumf %78, %79 : vector<16x256xf32>
    %81 = vector.extract_strided_slice %80 {offsets = [0, 0], sizes = [8, 256], strides = [1, 1]} : vector<16x256xf32> to vector<8x256xf32>
    %82 = vector.extract_strided_slice %80 {offsets = [8, 0], sizes = [8, 256], strides = [1, 1]} : vector<16x256xf32> to vector<8x256xf32>
    %c17_i32_42 = arith.constant 17 : i32
    %83 = tpu.dynamic_rotate %82 by %c17_i32_42 dim 1 : vector<8x256xf32>, i32 -> vector<8x256xf32>
    %c6_43 = arith.constant 6 : index
    %c0_44 = arith.constant 0 : index
    %84 = vector.load %arg2[%c6_43, %c0_44] : memref<25x256xf32, #tpu.memory_space<vmem>>, vector<1x256xf32>
    %85 = vector.broadcast %84 : vector<1x256xf32> to vector<8x256xf32>
    %86 = arith.mulf %83, %85 : vector<8x256xf32>
    %87 = arith.maximumf %82, %86 : vector<8x256xf32>
    %c16_i32_45 = arith.constant 16 : i32
    %88 = tpu.dynamic_rotate %82 by %c16_i32_45 dim 1 : vector<8x256xf32>, i32 -> vector<8x256xf32>
    %c7_46 = arith.constant 7 : index
    %c0_47 = arith.constant 0 : index
    %89 = vector.load %arg2[%c7_46, %c0_47] : memref<25x256xf32, #tpu.memory_space<vmem>>, vector<1x256xf32>
    %90 = vector.broadcast %89 : vector<1x256xf32> to vector<8x256xf32>
    %91 = arith.mulf %88, %90 : vector<8x256xf32>
    %92 = arith.maximumf %87, %91 : vector<8x256xf32>
    %c15_i32_48 = arith.constant 15 : i32
    %93 = tpu.dynamic_rotate %82 by %c15_i32_48 dim 1 : vector<8x256xf32>, i32 -> vector<8x256xf32>
    %c8_49 = arith.constant 8 : index
    %c0_50 = arith.constant 0 : index
    %94 = vector.load %arg2[%c8_49, %c0_50] : memref<25x256xf32, #tpu.memory_space<vmem>>, vector<1x256xf32>
    %95 = vector.broadcast %94 : vector<1x256xf32> to vector<8x256xf32>
    %96 = arith.mulf %93, %95 : vector<8x256xf32>
    %97 = arith.maximumf %92, %96 : vector<8x256xf32>
    %c1_i32_51 = arith.constant 1 : i32
    %98 = tpu.dynamic_rotate %82 by %c1_i32_51 dim 1 : vector<8x256xf32>, i32 -> vector<8x256xf32>
    %c11_52 = arith.constant 11 : index
    %c0_53 = arith.constant 0 : index
    %99 = vector.load %arg2[%c11_52, %c0_53] : memref<25x256xf32, #tpu.memory_space<vmem>>, vector<1x256xf32>
    %100 = vector.broadcast %99 : vector<1x256xf32> to vector<8x256xf32>
    %101 = arith.mulf %98, %100 : vector<8x256xf32>
    %102 = arith.maximumf %97, %101 : vector<8x256xf32>
    %c255_i32_54 = arith.constant 255 : i32
    %103 = tpu.dynamic_rotate %82 by %c255_i32_54 dim 1 : vector<8x256xf32>, i32 -> vector<8x256xf32>
    %c13_55 = arith.constant 13 : index
    %c0_56 = arith.constant 0 : index
    %104 = vector.load %arg2[%c13_55, %c0_56] : memref<25x256xf32, #tpu.memory_space<vmem>>, vector<1x256xf32>
    %105 = vector.broadcast %104 : vector<1x256xf32> to vector<8x256xf32>
    %106 = arith.mulf %103, %105 : vector<8x256xf32>
    %107 = arith.maximumf %102, %106 : vector<8x256xf32>
    %c241_i32_57 = arith.constant 241 : i32
    %108 = tpu.dynamic_rotate %82 by %c241_i32_57 dim 1 : vector<8x256xf32>, i32 -> vector<8x256xf32>
    %c16_58 = arith.constant 16 : index
    %c0_59 = arith.constant 0 : index
    %109 = vector.load %arg2[%c16_58, %c0_59] : memref<25x256xf32, #tpu.memory_space<vmem>>, vector<1x256xf32>
    %110 = vector.broadcast %109 : vector<1x256xf32> to vector<8x256xf32>
    %111 = arith.mulf %108, %110 : vector<8x256xf32>
    %112 = arith.maximumf %107, %111 : vector<8x256xf32>
    %c240_i32_60 = arith.constant 240 : i32
    %113 = tpu.dynamic_rotate %82 by %c240_i32_60 dim 1 : vector<8x256xf32>, i32 -> vector<8x256xf32>
    %c17_61 = arith.constant 17 : index
    %c0_62 = arith.constant 0 : index
    %114 = vector.load %arg2[%c17_61, %c0_62] : memref<25x256xf32, #tpu.memory_space<vmem>>, vector<1x256xf32>
    %115 = vector.broadcast %114 : vector<1x256xf32> to vector<8x256xf32>
    %116 = arith.mulf %113, %115 : vector<8x256xf32>
    %117 = arith.maximumf %112, %116 : vector<8x256xf32>
    %c239_i32_63 = arith.constant 239 : i32
    %118 = tpu.dynamic_rotate %82 by %c239_i32_63 dim 1 : vector<8x256xf32>, i32 -> vector<8x256xf32>
    %c18_64 = arith.constant 18 : index
    %c0_65 = arith.constant 0 : index
    %119 = vector.load %arg2[%c18_64, %c0_65] : memref<25x256xf32, #tpu.memory_space<vmem>>, vector<1x256xf32>
    %120 = vector.broadcast %119 : vector<1x256xf32> to vector<8x256xf32>
    %121 = arith.mulf %118, %120 : vector<8x256xf32>
    %122 = arith.maximumf %117, %121 : vector<8x256xf32>
    %c34_i32 = arith.constant 34 : i32
    %123 = tpu.dynamic_rotate %81 by %c34_i32 dim 1 : vector<8x256xf32>, i32 -> vector<8x256xf32>
    %c0_66 = arith.constant 0 : index
    %c0_67 = arith.constant 0 : index
    %124 = vector.load %arg2[%c0_66, %c0_67] : memref<25x256xf32, #tpu.memory_space<vmem>>, vector<1x256xf32>
    %125 = vector.broadcast %124 : vector<1x256xf32> to vector<8x256xf32>
    %126 = arith.mulf %123, %125 : vector<8x256xf32>
    %c33_i32 = arith.constant 33 : i32
    %127 = tpu.dynamic_rotate %81 by %c33_i32 dim 1 : vector<8x256xf32>, i32 -> vector<8x256xf32>
    %c1 = arith.constant 1 : index
    %c0_68 = arith.constant 0 : index
    %128 = vector.load %arg2[%c1, %c0_68] : memref<25x256xf32, #tpu.memory_space<vmem>>, vector<1x256xf32>
    %129 = vector.broadcast %128 : vector<1x256xf32> to vector<8x256xf32>
    %130 = arith.mulf %127, %129 : vector<8x256xf32>
    %c32_i32 = arith.constant 32 : i32
    %131 = tpu.dynamic_rotate %81 by %c32_i32 dim 1 : vector<8x256xf32>, i32 -> vector<8x256xf32>
    %c2 = arith.constant 2 : index
    %c0_69 = arith.constant 0 : index
    %132 = vector.load %arg2[%c2, %c0_69] : memref<25x256xf32, #tpu.memory_space<vmem>>, vector<1x256xf32>
    %133 = vector.broadcast %132 : vector<1x256xf32> to vector<8x256xf32>
    %134 = arith.mulf %131, %133 : vector<8x256xf32>
    %c31_i32 = arith.constant 31 : i32
    %135 = tpu.dynamic_rotate %81 by %c31_i32 dim 1 : vector<8x256xf32>, i32 -> vector<8x256xf32>
    %c3 = arith.constant 3 : index
    %c0_70 = arith.constant 0 : index
    %136 = vector.load %arg2[%c3, %c0_70] : memref<25x256xf32, #tpu.memory_space<vmem>>, vector<1x256xf32>
    %137 = vector.broadcast %136 : vector<1x256xf32> to vector<8x256xf32>
    %138 = arith.mulf %135, %137 : vector<8x256xf32>
    %c30_i32 = arith.constant 30 : i32
    %139 = tpu.dynamic_rotate %81 by %c30_i32 dim 1 : vector<8x256xf32>, i32 -> vector<8x256xf32>
    %c4 = arith.constant 4 : index
    %c0_71 = arith.constant 0 : index
    %140 = vector.load %arg2[%c4, %c0_71] : memref<25x256xf32, #tpu.memory_space<vmem>>, vector<1x256xf32>
    %141 = vector.broadcast %140 : vector<1x256xf32> to vector<8x256xf32>
    %142 = arith.mulf %139, %141 : vector<8x256xf32>
    %c18_i32 = arith.constant 18 : i32
    %143 = tpu.dynamic_rotate %81 by %c18_i32 dim 1 : vector<8x256xf32>, i32 -> vector<8x256xf32>
    %c5 = arith.constant 5 : index
    %c0_72 = arith.constant 0 : index
    %144 = vector.load %arg2[%c5, %c0_72] : memref<25x256xf32, #tpu.memory_space<vmem>>, vector<1x256xf32>
    %145 = vector.broadcast %144 : vector<1x256xf32> to vector<8x256xf32>
    %146 = arith.mulf %143, %145 : vector<8x256xf32>
    %c17_i32_73 = arith.constant 17 : i32
    %147 = tpu.dynamic_rotate %81 by %c17_i32_73 dim 1 : vector<8x256xf32>, i32 -> vector<8x256xf32>
    %c6_74 = arith.constant 6 : index
    %c0_75 = arith.constant 0 : index
    %148 = vector.load %arg2[%c6_74, %c0_75] : memref<25x256xf32, #tpu.memory_space<vmem>>, vector<1x256xf32>
    %149 = vector.broadcast %148 : vector<1x256xf32> to vector<8x256xf32>
    %150 = arith.mulf %147, %149 : vector<8x256xf32>
    %c16_i32_76 = arith.constant 16 : i32
    %151 = tpu.dynamic_rotate %81 by %c16_i32_76 dim 1 : vector<8x256xf32>, i32 -> vector<8x256xf32>
    %c7_77 = arith.constant 7 : index
    %c0_78 = arith.constant 0 : index
    %152 = vector.load %arg2[%c7_77, %c0_78] : memref<25x256xf32, #tpu.memory_space<vmem>>, vector<1x256xf32>
    %153 = vector.broadcast %152 : vector<1x256xf32> to vector<8x256xf32>
    %154 = arith.mulf %151, %153 : vector<8x256xf32>
    %c15_i32_79 = arith.constant 15 : i32
    %155 = tpu.dynamic_rotate %81 by %c15_i32_79 dim 1 : vector<8x256xf32>, i32 -> vector<8x256xf32>
    %c8_80 = arith.constant 8 : index
    %c0_81 = arith.constant 0 : index
    %156 = vector.load %arg2[%c8_80, %c0_81] : memref<25x256xf32, #tpu.memory_space<vmem>>, vector<1x256xf32>
    %157 = vector.broadcast %156 : vector<1x256xf32> to vector<8x256xf32>
    %158 = arith.mulf %155, %157 : vector<8x256xf32>
    %c14_i32 = arith.constant 14 : i32
    %159 = tpu.dynamic_rotate %81 by %c14_i32 dim 1 : vector<8x256xf32>, i32 -> vector<8x256xf32>
    %c9 = arith.constant 9 : index
    %c0_82 = arith.constant 0 : index
    %160 = vector.load %arg2[%c9, %c0_82] : memref<25x256xf32, #tpu.memory_space<vmem>>, vector<1x256xf32>
    %161 = vector.broadcast %160 : vector<1x256xf32> to vector<8x256xf32>
    %162 = arith.mulf %159, %161 : vector<8x256xf32>
    %c2_i32 = arith.constant 2 : i32
    %163 = tpu.dynamic_rotate %81 by %c2_i32 dim 1 : vector<8x256xf32>, i32 -> vector<8x256xf32>
    %c10 = arith.constant 10 : index
    %c0_83 = arith.constant 0 : index
    %164 = vector.load %arg2[%c10, %c0_83] : memref<25x256xf32, #tpu.memory_space<vmem>>, vector<1x256xf32>
    %165 = vector.broadcast %164 : vector<1x256xf32> to vector<8x256xf32>
    %166 = arith.mulf %163, %165 : vector<8x256xf32>
    %c1_i32_84 = arith.constant 1 : i32
    %167 = tpu.dynamic_rotate %81 by %c1_i32_84 dim 1 : vector<8x256xf32>, i32 -> vector<8x256xf32>
    %c11_85 = arith.constant 11 : index
    %c0_86 = arith.constant 0 : index
    %168 = vector.load %arg2[%c11_85, %c0_86] : memref<25x256xf32, #tpu.memory_space<vmem>>, vector<1x256xf32>
    %169 = vector.broadcast %168 : vector<1x256xf32> to vector<8x256xf32>
    %170 = arith.mulf %167, %169 : vector<8x256xf32>
    %c255_i32_87 = arith.constant 255 : i32
    %171 = tpu.dynamic_rotate %81 by %c255_i32_87 dim 1 : vector<8x256xf32>, i32 -> vector<8x256xf32>
    %c13_88 = arith.constant 13 : index
    %c0_89 = arith.constant 0 : index
    %172 = vector.load %arg2[%c13_88, %c0_89] : memref<25x256xf32, #tpu.memory_space<vmem>>, vector<1x256xf32>
    %173 = vector.broadcast %172 : vector<1x256xf32> to vector<8x256xf32>
    %174 = arith.mulf %171, %173 : vector<8x256xf32>
    %c254_i32 = arith.constant 254 : i32
    %175 = tpu.dynamic_rotate %81 by %c254_i32 dim 1 : vector<8x256xf32>, i32 -> vector<8x256xf32>
    %c14 = arith.constant 14 : index
    %c0_90 = arith.constant 0 : index
    %176 = vector.load %arg2[%c14, %c0_90] : memref<25x256xf32, #tpu.memory_space<vmem>>, vector<1x256xf32>
    %177 = vector.broadcast %176 : vector<1x256xf32> to vector<8x256xf32>
    %178 = arith.mulf %175, %177 : vector<8x256xf32>
    %c242_i32 = arith.constant 242 : i32
    %179 = tpu.dynamic_rotate %81 by %c242_i32 dim 1 : vector<8x256xf32>, i32 -> vector<8x256xf32>
    %c15 = arith.constant 15 : index
    %c0_91 = arith.constant 0 : index
    %180 = vector.load %arg2[%c15, %c0_91] : memref<25x256xf32, #tpu.memory_space<vmem>>, vector<1x256xf32>
    %181 = vector.broadcast %180 : vector<1x256xf32> to vector<8x256xf32>
    %182 = arith.mulf %179, %181 : vector<8x256xf32>
    %c241_i32_92 = arith.constant 241 : i32
    %183 = tpu.dynamic_rotate %81 by %c241_i32_92 dim 1 : vector<8x256xf32>, i32 -> vector<8x256xf32>
    %c16_93 = arith.constant 16 : index
    %c0_94 = arith.constant 0 : index
    %184 = vector.load %arg2[%c16_93, %c0_94] : memref<25x256xf32, #tpu.memory_space<vmem>>, vector<1x256xf32>
    %185 = vector.broadcast %184 : vector<1x256xf32> to vector<8x256xf32>
    %186 = arith.mulf %183, %185 : vector<8x256xf32>
    %c240_i32_95 = arith.constant 240 : i32
    %187 = tpu.dynamic_rotate %81 by %c240_i32_95 dim 1 : vector<8x256xf32>, i32 -> vector<8x256xf32>
    %c17_96 = arith.constant 17 : index
    %c0_97 = arith.constant 0 : index
    %188 = vector.load %arg2[%c17_96, %c0_97] : memref<25x256xf32, #tpu.memory_space<vmem>>, vector<1x256xf32>
    %189 = vector.broadcast %188 : vector<1x256xf32> to vector<8x256xf32>
    %190 = arith.mulf %187, %189 : vector<8x256xf32>
    %c239_i32_98 = arith.constant 239 : i32
    %191 = tpu.dynamic_rotate %81 by %c239_i32_98 dim 1 : vector<8x256xf32>, i32 -> vector<8x256xf32>
    %c18_99 = arith.constant 18 : index
    %c0_100 = arith.constant 0 : index
    %192 = vector.load %arg2[%c18_99, %c0_100] : memref<25x256xf32, #tpu.memory_space<vmem>>, vector<1x256xf32>
    %193 = vector.broadcast %192 : vector<1x256xf32> to vector<8x256xf32>
    %194 = arith.mulf %191, %193 : vector<8x256xf32>
    %c238_i32 = arith.constant 238 : i32
    %195 = tpu.dynamic_rotate %81 by %c238_i32 dim 1 : vector<8x256xf32>, i32 -> vector<8x256xf32>
    %c19 = arith.constant 19 : index
    %c0_101 = arith.constant 0 : index
    %196 = vector.load %arg2[%c19, %c0_101] : memref<25x256xf32, #tpu.memory_space<vmem>>, vector<1x256xf32>
    %197 = vector.broadcast %196 : vector<1x256xf32> to vector<8x256xf32>
    %198 = arith.mulf %195, %197 : vector<8x256xf32>
    %c226_i32 = arith.constant 226 : i32
    %199 = tpu.dynamic_rotate %81 by %c226_i32 dim 1 : vector<8x256xf32>, i32 -> vector<8x256xf32>
    %c20 = arith.constant 20 : index
    %c0_102 = arith.constant 0 : index
    %200 = vector.load %arg2[%c20, %c0_102] : memref<25x256xf32, #tpu.memory_space<vmem>>, vector<1x256xf32>
    %201 = vector.broadcast %200 : vector<1x256xf32> to vector<8x256xf32>
    %202 = arith.mulf %199, %201 : vector<8x256xf32>
    %c225_i32 = arith.constant 225 : i32
    %203 = tpu.dynamic_rotate %81 by %c225_i32 dim 1 : vector<8x256xf32>, i32 -> vector<8x256xf32>
    %c21 = arith.constant 21 : index
    %c0_103 = arith.constant 0 : index
    %204 = vector.load %arg2[%c21, %c0_103] : memref<25x256xf32, #tpu.memory_space<vmem>>, vector<1x256xf32>
    %205 = vector.broadcast %204 : vector<1x256xf32> to vector<8x256xf32>
    %206 = arith.mulf %203, %205 : vector<8x256xf32>
    %c224_i32 = arith.constant 224 : i32
    %207 = tpu.dynamic_rotate %81 by %c224_i32 dim 1 : vector<8x256xf32>, i32 -> vector<8x256xf32>
    %c22 = arith.constant 22 : index
    %c0_104 = arith.constant 0 : index
    %208 = vector.load %arg2[%c22, %c0_104] : memref<25x256xf32, #tpu.memory_space<vmem>>, vector<1x256xf32>
    %209 = vector.broadcast %208 : vector<1x256xf32> to vector<8x256xf32>
    %210 = arith.mulf %207, %209 : vector<8x256xf32>
    %c223_i32 = arith.constant 223 : i32
    %211 = tpu.dynamic_rotate %81 by %c223_i32 dim 1 : vector<8x256xf32>, i32 -> vector<8x256xf32>
    %c23 = arith.constant 23 : index
    %c0_105 = arith.constant 0 : index
    %212 = vector.load %arg2[%c23, %c0_105] : memref<25x256xf32, #tpu.memory_space<vmem>>, vector<1x256xf32>
    %213 = vector.broadcast %212 : vector<1x256xf32> to vector<8x256xf32>
    %214 = arith.mulf %211, %213 : vector<8x256xf32>
    %c222_i32 = arith.constant 222 : i32
    %215 = tpu.dynamic_rotate %81 by %c222_i32 dim 1 : vector<8x256xf32>, i32 -> vector<8x256xf32>
    %c24 = arith.constant 24 : index
    %c0_106 = arith.constant 0 : index
    %216 = vector.load %arg2[%c24, %c0_106] : memref<25x256xf32, #tpu.memory_space<vmem>>, vector<1x256xf32>
    %217 = vector.broadcast %216 : vector<1x256xf32> to vector<8x256xf32>
    %218 = arith.mulf %215, %217 : vector<8x256xf32>
    %219 = tpu.concatenate %126, %130, %134, %138, %142, %146, %150, %154, %158, %162, %166, %170, %81, %174, %178, %182 in 0 : vector<8x256xf32>, vector<8x256xf32>, vector<8x256xf32>, vector<8x256xf32>, vector<8x256xf32>, vector<8x256xf32>, vector<8x256xf32>, vector<8x256xf32>, vector<8x256xf32>, vector<8x256xf32>, vector<8x256xf32>, vector<8x256xf32>, vector<8x256xf32>, vector<8x256xf32>, vector<8x256xf32>, vector<8x256xf32> -> vector<128x256xf32>
    %220 = tpu.concatenate %186, %190, %194, %198, %202, %206, %210, %214, %218, %2 in 0 : vector<8x256xf32>, vector<8x256xf32>, vector<8x256xf32>, vector<8x256xf32>, vector<8x256xf32>, vector<8x256xf32>, vector<8x256xf32>, vector<8x256xf32>, vector<8x256xf32>, vector<1x256xf32> -> vector<73x256xf32>
    %221 = tpu.concatenate %219, %220 in 0 : vector<128x256xf32>, vector<73x256xf32> -> vector<201x256xf32>
    %c0_107 = arith.constant 0 : index
    %c0_108 = arith.constant 0 : index
    %222 = vector.load %arg5[%c0_107, %c0_108] : memref<8x201xf32, #tpu.memory_space<vmem>>, vector<8x201xf32>
    %cst_109 = arith.constant dense<0.000000e+00> : vector<8x256xf32>
    %223 = tpu.matmul %222, %221, %cst_109 {dimension_numbers = #tpu.dot_dimension_numbers<[1], [0], [0], [1], [0, 0, 1, 1], [], []>} : vector<8x201xf32>, vector<201x256xf32>, vector<8x256xf32> -> vector<8x256xf32>
    %cst_110 = arith.constant 0.000000e+00 : f32
    %224 = vector.broadcast %cst_110 : f32 to vector<8x256xf32>
    %225 = arith.maximumf %223, %224 : vector<8x256xf32>
    %226 = arith.addf %225, %41 : vector<8x256xf32>
    %c17_i32_111 = arith.constant 17 : i32
    %227 = tpu.dynamic_rotate %41 by %c17_i32_111 dim 1 : vector<8x256xf32>, i32 -> vector<8x256xf32>
    %c6_112 = arith.constant 6 : index
    %c0_113 = arith.constant 0 : index
    %228 = vector.load %arg2[%c6_112, %c0_113] : memref<25x256xf32, #tpu.memory_space<vmem>>, vector<1x256xf32>
    %229 = vector.broadcast %228 : vector<1x256xf32> to vector<8x256xf32>
    %230 = arith.mulf %227, %229 : vector<8x256xf32>
    %231 = arith.maximumf %41, %230 : vector<8x256xf32>
    %c16_i32_114 = arith.constant 16 : i32
    %232 = tpu.dynamic_rotate %41 by %c16_i32_114 dim 1 : vector<8x256xf32>, i32 -> vector<8x256xf32>
    %c7_115 = arith.constant 7 : index
    %c0_116 = arith.constant 0 : index
    %233 = vector.load %arg2[%c7_115, %c0_116] : memref<25x256xf32, #tpu.memory_space<vmem>>, vector<1x256xf32>
    %234 = vector.broadcast %233 : vector<1x256xf32> to vector<8x256xf32>
    %235 = arith.mulf %232, %234 : vector<8x256xf32>
    %236 = arith.maximumf %231, %235 : vector<8x256xf32>
    %c15_i32_117 = arith.constant 15 : i32
    %237 = tpu.dynamic_rotate %41 by %c15_i32_117 dim 1 : vector<8x256xf32>, i32 -> vector<8x256xf32>
    %c8_118 = arith.constant 8 : index
    %c0_119 = arith.constant 0 : index
    %238 = vector.load %arg2[%c8_118, %c0_119] : memref<25x256xf32, #tpu.memory_space<vmem>>, vector<1x256xf32>
    %239 = vector.broadcast %238 : vector<1x256xf32> to vector<8x256xf32>
    %240 = arith.mulf %237, %239 : vector<8x256xf32>
    %241 = arith.maximumf %236, %240 : vector<8x256xf32>
    %c1_i32_120 = arith.constant 1 : i32
    %242 = tpu.dynamic_rotate %41 by %c1_i32_120 dim 1 : vector<8x256xf32>, i32 -> vector<8x256xf32>
    %c11_121 = arith.constant 11 : index
    %c0_122 = arith.constant 0 : index
    %243 = vector.load %arg2[%c11_121, %c0_122] : memref<25x256xf32, #tpu.memory_space<vmem>>, vector<1x256xf32>
    %244 = vector.broadcast %243 : vector<1x256xf32> to vector<8x256xf32>
    %245 = arith.mulf %242, %244 : vector<8x256xf32>
    %246 = arith.maximumf %241, %245 : vector<8x256xf32>
    %c255_i32_123 = arith.constant 255 : i32
    %247 = tpu.dynamic_rotate %41 by %c255_i32_123 dim 1 : vector<8x256xf32>, i32 -> vector<8x256xf32>
    %c13_124 = arith.constant 13 : index
    %c0_125 = arith.constant 0 : index
    %248 = vector.load %arg2[%c13_124, %c0_125] : memref<25x256xf32, #tpu.memory_space<vmem>>, vector<1x256xf32>
    %249 = vector.broadcast %248 : vector<1x256xf32> to vector<8x256xf32>
    %250 = arith.mulf %247, %249 : vector<8x256xf32>
    %251 = arith.maximumf %246, %250 : vector<8x256xf32>
    %c241_i32_126 = arith.constant 241 : i32
    %252 = tpu.dynamic_rotate %41 by %c241_i32_126 dim 1 : vector<8x256xf32>, i32 -> vector<8x256xf32>
    %c16_127 = arith.constant 16 : index
    %c0_128 = arith.constant 0 : index
    %253 = vector.load %arg2[%c16_127, %c0_128] : memref<25x256xf32, #tpu.memory_space<vmem>>, vector<1x256xf32>
    %254 = vector.broadcast %253 : vector<1x256xf32> to vector<8x256xf32>
    %255 = arith.mulf %252, %254 : vector<8x256xf32>
    %256 = arith.maximumf %251, %255 : vector<8x256xf32>
    %c240_i32_129 = arith.constant 240 : i32
    %257 = tpu.dynamic_rotate %41 by %c240_i32_129 dim 1 : vector<8x256xf32>, i32 -> vector<8x256xf32>
    %c17_130 = arith.constant 17 : index
    %c0_131 = arith.constant 0 : index
    %258 = vector.load %arg2[%c17_130, %c0_131] : memref<25x256xf32, #tpu.memory_space<vmem>>, vector<1x256xf32>
    %259 = vector.broadcast %258 : vector<1x256xf32> to vector<8x256xf32>
    %260 = arith.mulf %257, %259 : vector<8x256xf32>
    %261 = arith.maximumf %256, %260 : vector<8x256xf32>
    %c239_i32_132 = arith.constant 239 : i32
    %262 = tpu.dynamic_rotate %41 by %c239_i32_132 dim 1 : vector<8x256xf32>, i32 -> vector<8x256xf32>
    %c18_133 = arith.constant 18 : index
    %c0_134 = arith.constant 0 : index
    %263 = vector.load %arg2[%c18_133, %c0_134] : memref<25x256xf32, #tpu.memory_space<vmem>>, vector<1x256xf32>
    %264 = vector.broadcast %263 : vector<1x256xf32> to vector<8x256xf32>
    %265 = arith.mulf %262, %264 : vector<8x256xf32>
    %266 = arith.maximumf %261, %265 : vector<8x256xf32>
    %267 = arith.addf %41, %42 : vector<8x256xf32>
    %c17_i32_135 = arith.constant 17 : i32
    %268 = tpu.dynamic_rotate %267 by %c17_i32_135 dim 1 : vector<8x256xf32>, i32 -> vector<8x256xf32>
    %c6_136 = arith.constant 6 : index
    %c0_137 = arith.constant 0 : index
    %269 = vector.load %arg2[%c6_136, %c0_137] : memref<25x256xf32, #tpu.memory_space<vmem>>, vector<1x256xf32>
    %270 = vector.broadcast %269 : vector<1x256xf32> to vector<8x256xf32>
    %271 = arith.mulf %268, %270 : vector<8x256xf32>
    %c16_i32_138 = arith.constant 16 : i32
    %272 = tpu.dynamic_rotate %267 by %c16_i32_138 dim 1 : vector<8x256xf32>, i32 -> vector<8x256xf32>
    %c7_139 = arith.constant 7 : index
    %c0_140 = arith.constant 0 : index
    %273 = vector.load %arg2[%c7_139, %c0_140] : memref<25x256xf32, #tpu.memory_space<vmem>>, vector<1x256xf32>
    %274 = vector.broadcast %273 : vector<1x256xf32> to vector<8x256xf32>
    %275 = arith.mulf %272, %274 : vector<8x256xf32>
    %c15_i32_141 = arith.constant 15 : i32
    %276 = tpu.dynamic_rotate %267 by %c15_i32_141 dim 1 : vector<8x256xf32>, i32 -> vector<8x256xf32>
    %c8_142 = arith.constant 8 : index
    %c0_143 = arith.constant 0 : index
    %277 = vector.load %arg2[%c8_142, %c0_143] : memref<25x256xf32, #tpu.memory_space<vmem>>, vector<1x256xf32>
    %278 = vector.broadcast %277 : vector<1x256xf32> to vector<8x256xf32>
    %279 = arith.mulf %276, %278 : vector<8x256xf32>
    %c1_i32_144 = arith.constant 1 : i32
    %280 = tpu.dynamic_rotate %267 by %c1_i32_144 dim 1 : vector<8x256xf32>, i32 -> vector<8x256xf32>
    %c11_145 = arith.constant 11 : index
    %c0_146 = arith.constant 0 : index
    %281 = vector.load %arg2[%c11_145, %c0_146] : memref<25x256xf32, #tpu.memory_space<vmem>>, vector<1x256xf32>
    %282 = vector.broadcast %281 : vector<1x256xf32> to vector<8x256xf32>
    %283 = arith.mulf %280, %282 : vector<8x256xf32>
    %c255_i32_147 = arith.constant 255 : i32
    %284 = tpu.dynamic_rotate %267 by %c255_i32_147 dim 1 : vector<8x256xf32>, i32 -> vector<8x256xf32>
    %c13_148 = arith.constant 13 : index
    %c0_149 = arith.constant 0 : index
    %285 = vector.load %arg2[%c13_148, %c0_149] : memref<25x256xf32, #tpu.memory_space<vmem>>, vector<1x256xf32>
    %286 = vector.broadcast %285 : vector<1x256xf32> to vector<8x256xf32>
    %287 = arith.mulf %284, %286 : vector<8x256xf32>
    %c241_i32_150 = arith.constant 241 : i32
    %288 = tpu.dynamic_rotate %267 by %c241_i32_150 dim 1 : vector<8x256xf32>, i32 -> vector<8x256xf32>
    %c16_151 = arith.constant 16 : index
    %c0_152 = arith.constant 0 : index
    %289 = vector.load %arg2[%c16_151, %c0_152] : memref<25x256xf32, #tpu.memory_space<vmem>>, vector<1x256xf32>
    %290 = vector.broadcast %289 : vector<1x256xf32> to vector<8x256xf32>
    %291 = arith.mulf %288, %290 : vector<8x256xf32>
    %c240_i32_153 = arith.constant 240 : i32
    %292 = tpu.dynamic_rotate %267 by %c240_i32_153 dim 1 : vector<8x256xf32>, i32 -> vector<8x256xf32>
    %c17_154 = arith.constant 17 : index
    %c0_155 = arith.constant 0 : index
    %293 = vector.load %arg2[%c17_154, %c0_155] : memref<25x256xf32, #tpu.memory_space<vmem>>, vector<1x256xf32>
    %294 = vector.broadcast %293 : vector<1x256xf32> to vector<8x256xf32>
    %295 = arith.mulf %292, %294 : vector<8x256xf32>
    %c239_i32_156 = arith.constant 239 : i32
    %296 = tpu.dynamic_rotate %267 by %c239_i32_156 dim 1 : vector<8x256xf32>, i32 -> vector<8x256xf32>
    %c18_157 = arith.constant 18 : index
    %c0_158 = arith.constant 0 : index
    %297 = vector.load %arg2[%c18_157, %c0_158] : memref<25x256xf32, #tpu.memory_space<vmem>>, vector<1x256xf32>
    %298 = vector.broadcast %297 : vector<1x256xf32> to vector<8x256xf32>
    %299 = arith.mulf %296, %298 : vector<8x256xf32>
    %300 = tpu.concatenate %271, %275, %279, %283, %267, %287, %291, %295, %299, %2 in 0 : vector<8x256xf32>, vector<8x256xf32>, vector<8x256xf32>, vector<8x256xf32>, vector<8x256xf32>, vector<8x256xf32>, vector<8x256xf32>, vector<8x256xf32>, vector<8x256xf32>, vector<1x256xf32> -> vector<73x256xf32>
    %c0_159 = arith.constant 0 : index
    %c0_160 = arith.constant 0 : index
    %301 = vector.load %arg6[%c0_159, %c0_160] : memref<8x73xf32, #tpu.memory_space<vmem>>, vector<8x73xf32>
    %cst_161 = arith.constant dense<0.000000e+00> : vector<8x256xf32>
    %302 = tpu.matmul %301, %300, %cst_161 {dimension_numbers = #tpu.dot_dimension_numbers<[1], [0], [0], [1], [0, 0, 1, 1], [], []>} : vector<8x73xf32>, vector<73x256xf32>, vector<8x256xf32> -> vector<8x256xf32>
    %cst_162 = arith.constant 0.000000e+00 : f32
    %303 = vector.broadcast %cst_162 : f32 to vector<8x256xf32>
    %304 = arith.maximumf %302, %303 : vector<8x256xf32>
    %c17_i32_163 = arith.constant 17 : i32
    %305 = tpu.dynamic_rotate %42 by %c17_i32_163 dim 1 : vector<8x256xf32>, i32 -> vector<8x256xf32>
    %c6_164 = arith.constant 6 : index
    %c0_165 = arith.constant 0 : index
    %306 = vector.load %arg2[%c6_164, %c0_165] : memref<25x256xf32, #tpu.memory_space<vmem>>, vector<1x256xf32>
    %307 = vector.broadcast %306 : vector<1x256xf32> to vector<8x256xf32>
    %308 = arith.mulf %305, %307 : vector<8x256xf32>
    %c16_i32_166 = arith.constant 16 : i32
    %309 = tpu.dynamic_rotate %42 by %c16_i32_166 dim 1 : vector<8x256xf32>, i32 -> vector<8x256xf32>
    %c7_167 = arith.constant 7 : index
    %c0_168 = arith.constant 0 : index
    %310 = vector.load %arg2[%c7_167, %c0_168] : memref<25x256xf32, #tpu.memory_space<vmem>>, vector<1x256xf32>
    %311 = vector.broadcast %310 : vector<1x256xf32> to vector<8x256xf32>
    %312 = arith.mulf %309, %311 : vector<8x256xf32>
    %c15_i32_169 = arith.constant 15 : i32
    %313 = tpu.dynamic_rotate %42 by %c15_i32_169 dim 1 : vector<8x256xf32>, i32 -> vector<8x256xf32>
    %c8_170 = arith.constant 8 : index
    %c0_171 = arith.constant 0 : index
    %314 = vector.load %arg2[%c8_170, %c0_171] : memref<25x256xf32, #tpu.memory_space<vmem>>, vector<1x256xf32>
    %315 = vector.broadcast %314 : vector<1x256xf32> to vector<8x256xf32>
    %316 = arith.mulf %313, %315 : vector<8x256xf32>
    %c1_i32_172 = arith.constant 1 : i32
    %317 = tpu.dynamic_rotate %42 by %c1_i32_172 dim 1 : vector<8x256xf32>, i32 -> vector<8x256xf32>
    %c11_173 = arith.constant 11 : index
    %c0_174 = arith.constant 0 : index
    %318 = vector.load %arg2[%c11_173, %c0_174] : memref<25x256xf32, #tpu.memory_space<vmem>>, vector<1x256xf32>
    %319 = vector.broadcast %318 : vector<1x256xf32> to vector<8x256xf32>
    %320 = arith.mulf %317, %319 : vector<8x256xf32>
    %c255_i32_175 = arith.constant 255 : i32
    %321 = tpu.dynamic_rotate %42 by %c255_i32_175 dim 1 : vector<8x256xf32>, i32 -> vector<8x256xf32>
    %c13_176 = arith.constant 13 : index
    %c0_177 = arith.constant 0 : index
    %322 = vector.load %arg2[%c13_176, %c0_177] : memref<25x256xf32, #tpu.memory_space<vmem>>, vector<1x256xf32>
    %323 = vector.broadcast %322 : vector<1x256xf32> to vector<8x256xf32>
    %324 = arith.mulf %321, %323 : vector<8x256xf32>
    %c241_i32_178 = arith.constant 241 : i32
    %325 = tpu.dynamic_rotate %42 by %c241_i32_178 dim 1 : vector<8x256xf32>, i32 -> vector<8x256xf32>
    %c16_179 = arith.constant 16 : index
    %c0_180 = arith.constant 0 : index
    %326 = vector.load %arg2[%c16_179, %c0_180] : memref<25x256xf32, #tpu.memory_space<vmem>>, vector<1x256xf32>
    %327 = vector.broadcast %326 : vector<1x256xf32> to vector<8x256xf32>
    %328 = arith.mulf %325, %327 : vector<8x256xf32>
    %c240_i32_181 = arith.constant 240 : i32
    %329 = tpu.dynamic_rotate %42 by %c240_i32_181 dim 1 : vector<8x256xf32>, i32 -> vector<8x256xf32>
    %c17_182 = arith.constant 17 : index
    %c0_183 = arith.constant 0 : index
    %330 = vector.load %arg2[%c17_182, %c0_183] : memref<25x256xf32, #tpu.memory_space<vmem>>, vector<1x256xf32>
    %331 = vector.broadcast %330 : vector<1x256xf32> to vector<8x256xf32>
    %332 = arith.mulf %329, %331 : vector<8x256xf32>
    %c239_i32_184 = arith.constant 239 : i32
    %333 = tpu.dynamic_rotate %42 by %c239_i32_184 dim 1 : vector<8x256xf32>, i32 -> vector<8x256xf32>
    %c18_185 = arith.constant 18 : index
    %c0_186 = arith.constant 0 : index
    %334 = vector.load %arg2[%c18_185, %c0_186] : memref<25x256xf32, #tpu.memory_space<vmem>>, vector<1x256xf32>
    %335 = vector.broadcast %334 : vector<1x256xf32> to vector<8x256xf32>
    %336 = arith.mulf %333, %335 : vector<8x256xf32>
    %337 = tpu.concatenate %308, %312, %316, %320, %42, %324, %328, %332, %336, %2 in 0 : vector<8x256xf32>, vector<8x256xf32>, vector<8x256xf32>, vector<8x256xf32>, vector<8x256xf32>, vector<8x256xf32>, vector<8x256xf32>, vector<8x256xf32>, vector<8x256xf32>, vector<1x256xf32> -> vector<73x256xf32>
    %c0_187 = arith.constant 0 : index
    %c0_188 = arith.constant 0 : index
    %338 = vector.load %arg7[%c0_187, %c0_188] : memref<8x73xf32, #tpu.memory_space<vmem>>, vector<8x73xf32>
    %cst_189 = arith.constant dense<0.000000e+00> : vector<8x256xf32>
    %339 = tpu.matmul %338, %337, %cst_189 {dimension_numbers = #tpu.dot_dimension_numbers<[1], [0], [0], [1], [0, 0, 1, 1], [], []>} : vector<8x73xf32>, vector<73x256xf32>, vector<8x256xf32> -> vector<8x256xf32>
    %cst_190 = arith.constant 0.000000e+00 : f32
    %340 = vector.broadcast %cst_190 : f32 to vector<8x256xf32>
    %341 = arith.maximumf %339, %340 : vector<8x256xf32>
    %342 = tpu.concatenate %122, %226, %266, %304, %341, %43, %2 in 0 : vector<8x256xf32>, vector<8x256xf32>, vector<8x256xf32>, vector<8x256xf32>, vector<8x256xf32>, vector<8x256xf32>, vector<1x256xf32> -> vector<49x256xf32>
    %c0_191 = arith.constant 0 : index
    %c0_192 = arith.constant 0 : index
    %343 = vector.load %arg8[%c0_191, %c0_192] : memref<8x49xf32, #tpu.memory_space<vmem>>, vector<8x49xf32>
    %cst_193 = arith.constant dense<0.000000e+00> : vector<8x256xf32>
    %344 = tpu.matmul %343, %342, %cst_193 {dimension_numbers = #tpu.dot_dimension_numbers<[1], [0], [0], [1], [0, 0, 1, 1], [], []>} : vector<8x49xf32>, vector<49x256xf32>, vector<8x256xf32> -> vector<8x256xf32>
    %c0_194 = arith.constant 0 : index
    %c0_195 = arith.constant 0 : index
    %c0_196 = arith.constant 0 : index
    %345 = vector.load %arg9[%c0_194, %c0_195, %c0_196] : memref<1x8x256xf32, #tpu.memory_space<vmem>>, vector<1x8x256xf32>
    %346 = vector.shape_cast %345 : vector<1x8x256xf32> to vector<8x256xf32>
    %347 = vector.shape_cast %344 : vector<8x256xf32> to vector<1x8x256xf32>
    tpu.vector_store %arg9[%c0_194, %c0_195, %c0_196], %347 {strides = array<i32>} : memref<1x8x256xf32, #tpu.memory_space<vmem>>, vector<1x8x256xf32>,
    return
  }
  func.func @transform_0(%arg0: i32) -> (i32, i32, i32) {
    %c0_i32 = arith.constant 0 : i32
    %c0_i32_0 = arith.constant 0 : i32
    %c0_i32_1 = arith.constant 0 : i32
    return %arg0, %c0_i32, %c0_i32_0 : i32, i32, i32
  }
  func.func @transform_1(%arg0: i32) -> (i32, i32) {
    %c0_i32 = arith.constant 0 : i32
    %c0_i32_0 = arith.constant 0 : i32
    %c0_i32_1 = arith.constant 0 : i32
    return %c0_i32, %c0_i32_0 : i32, i32
  }
  func.func @transform_2(%arg0: i32) -> (i32, i32) {
    %c0_i32 = arith.constant 0 : i32
    %c0_i32_0 = arith.constant 0 : i32
    %c0_i32_1 = arith.constant 0 : i32
    return %c0_i32, %c0_i32_0 : i32, i32
  }
  func.func @transform_3(%arg0: i32) -> (i32, i32) {
    %c0_i32 = arith.constant 0 : i32
    %c0_i32_0 = arith.constant 0 : i32
    %c0_i32_1 = arith.constant 0 : i32
    return %c0_i32, %c0_i32_0 : i32, i32
  }
  func.func @transform_4(%arg0: i32) -> (i32, i32) {
    %c0_i32 = arith.constant 0 : i32
    %c0_i32_0 = arith.constant 0 : i32
    %c0_i32_1 = arith.constant 0 : i32
    return %c0_i32, %c0_i32_0 : i32, i32
  }
  func.func @transform_5(%arg0: i32) -> (i32, i32) {
    %c0_i32 = arith.constant 0 : i32
    %c0_i32_0 = arith.constant 0 : i32
    %c0_i32_1 = arith.constant 0 : i32
    return %c0_i32, %c0_i32_0 : i32, i32
  }
  func.func @transform_6(%arg0: i32) -> (i32, i32) {
    %c0_i32 = arith.constant 0 : i32
    %c0_i32_0 = arith.constant 0 : i32
    %c0_i32_1 = arith.constant 0 : i32
    return %c0_i32, %c0_i32_0 : i32, i32
  }
  func.func @transform_7(%arg0: i32) -> (i32, i32) {
    %c0_i32 = arith.constant 0 : i32
    %c0_i32_0 = arith.constant 0 : i32
    %c0_i32_1 = arith.constant 0 : i32
    return %c0_i32, %c0_i32_0 : i32, i32
  }
  func.func @transform_8(%arg0: i32) -> (i32, i32, i32) {
    %c0_i32 = arith.constant 0 : i32
    %c0_i32_0 = arith.constant 0 : i32
    %c0_i32_1 = arith.constant 0 : i32
    return %arg0, %c0_i32, %c0_i32_0 : i32, i32, i32
  }
}

</mosaic_0001>

<llo_original>
// kernel: qnns_forward.1
$region0: #{qnns_forward.1}
  #allocation0 [shape = 'u32[]', space=smem, size = 0x4, offset = 0x4, fixed_abs, tag = 'smem constant byte address 0x4 - core index']
  #allocation1 [shape = 'u32[144,128]{1,0:T(1,128)}', space=vmem, size = 0x12000, scoped, tag = 'internal scratch']
  %s0 = inlined_call_operand.vmem [shape: f32[2,8,256], index: 0, kind: input, shape index: {}]
  %s1 = inlined_call_operand.vmem [shape: f32[25,256], index: 1, kind: input, shape index: {}]
  %s2 = inlined_call_operand.vmem [shape: f32[32,73], index: 2, kind: input, shape index: {}]
  %s3 = inlined_call_operand.vmem [shape: f32[16,73], index: 3, kind: input, shape index: {}]
  %s4 = inlined_call_operand.vmem [shape: f32[8,201], index: 4, kind: input, shape index: {}]
  %s5 = inlined_call_operand.vmem [shape: f32[8,73], index: 5, kind: input, shape index: {}]
  %s6 = inlined_call_operand.vmem [shape: f32[8,73], index: 6, kind: input, shape index: {}]
  %s7 = inlined_call_operand.vmem [shape: f32[8,49], index: 7, kind: input, shape index: {}]
  %s8 = inlined_call_operand.vmem [shape: f32[2,8,256], index: 8, kind: output, shape index: {}]
  %s9 = sld [smem:[#allocation0]]
  $region65: #{qnns_forward.1} parent=0
    _
  %s11 = ssub.s32 1, %s9
  %s12 = scalar_select 0, %s11, %s9
  loop: start=0, step=1, limit=4
  $region2: #{qnns_forward.1} parent=0 // loop_pre_header
    _
  $region3: #{qnns_forward.1} parent=0 // loop_header
    %s14 = sphi 0, %s18
    %p15 = scmp.ge.s32.totalorder %s14, 4
    %s24 = sphi 0, %s26
    %s27 = sphi 0, %s24
    %s28 = sphi 0, %s27
    %s44 = sphi 0, %s28
    %s48 = sphi 0, %s48
    %s50 = sphi 0, %s48
    %s51 = sphi 0, %s50
    %s65 = sphi 0, %s51
    %s69 = sphi 0, %s69
    %s71 = sphi 0, %s69
    %s72 = sphi 0, %s71
    %s86 = sphi 0, %s72
    %s90 = sphi 0, %s90
    %s92 = sphi 0, %s90
    %s93 = sphi 0, %s92
    %s107 = sphi 0, %s93
    %s111 = sphi 0, %s111
    %s113 = sphi 0, %s111
    %s114 = sphi 0, %s113
    %s128 = sphi 0, %s114
    %s132 = sphi 0, %s132
    %s134 = sphi 0, %s132
    %s135 = sphi 0, %s134
    %s149 = sphi 0, %s135
    %s153 = sphi 0, %s153
    %s155 = sphi 0, %s153
    %s156 = sphi 0, %s155
    %s170 = sphi 0, %s156
    %s174 = sphi 0, %s174
    %s176 = sphi 0, %s174
    %s177 = sphi 0, %s176
    %s191 = sphi 0, %s177
    %s197 = sphi 0, %s199
    %s200 = sphi 0, %s197
    %s201 = sphi 0, %s200
    %s217 = sphi 0, %s201
  $region4: #{qnns_forward.1} parent=0 // loop_header_branch
    %17 = sbr.rel (%p15) target = $region8
  $region5: #{qnns_forward.1} parent=0 // loop_body
    %s19 = ssub.s32 %s14, 1
    %s20 = ssub.s32 %s14, 2
    %s21 = sadd.s32 %s14, 1
    %s22 = ssub.s32 %s14, %s21
    %p23 = scmp.eq.s32.totalorder %s22, 0
    %s25 = sadd.s32 %s24, 1
    %s26 = scalar_select %p23, %s24, %s25
    %p29 = pneg %p23
    %p30 = scmp.eq.s32.totalorder %s14, 1
    %p31 = por %p29, %p30
    %p32 = scmp.ne.s32.totalorder %s24, %s27
    %p33 = scmp.eq.s32.totalorder %s14, 0
    %p34 = por %p32, %p33
    %p35 = scmp.ne.s32.totalorder %s24, %s27
    %p36 = scmp.eq.s32.totalorder %s19, 1
    %p37 = por %p35, %p36
    %p38 = scmp.ne.s32.totalorder %s27, %s28
    %p39 = scmp.eq.s32.totalorder %s19, 0
    %p40 = por %p38, %p39
    %p41 = scmp.ne.s32.totalorder %s27, %s28
    %p42 = scmp.eq.s32.totalorder %s20, 1
    %p43 = por %p41, %p42
    %p45 = scmp.ne.s32.totalorder %s28, %s44
    %p46 = scmp.eq.s32.totalorder %s20, 0
    %p47 = por %p45, %p46
    %s49 = sadd.s32 %s48, 1
    %p52 = scmp.eq.s32.totalorder %s14, 1
    %p53 = scmp.ne.s32.totalorder %s48, %s50
    %p54 = scmp.eq.s32.totalorder %s14, 0
    %p55 = por %p53, %p54
    %p56 = scmp.ne.s32.totalorder %s48, %s50
    %p57 = scmp.eq.s32.totalorder %s19, 1
    %p58 = por %p56, %p57
    %p59 = scmp.ne.s32.totalorder %s50, %s51
    %p60 = scmp.eq.s32.totalorder %s19, 0
    %p61 = por %p59, %p60
    %p62 = scmp.ne.s32.totalorder %s50, %s51
    %p63 = scmp.eq.s32.totalorder %s20, 1
    %p64 = por %p62, %p63
    %p66 = scmp.ne.s32.totalorder %s51, %s65
    %p67 = scmp.eq.s32.totalorder %s20, 0
    %p68 = por %p66, %p67
    %s70 = sadd.s32 %s69, 1
    %p73 = scmp.eq.s32.totalorder %s14, 1
    %p74 = scmp.ne.s32.totalorder %s69, %s71
    %p75 = scmp.eq.s32.totalorder %s14, 0
    %p76 = por %p74, %p75
    %p77 = scmp.ne.s32.totalorder %s69, %s71
    %p78 = scmp.eq.s32.totalorder %s19, 1
    %p79 = por %p77, %p78
    %p80 = scmp.ne.s32.totalorder %s71, %s72
    %p81 = scmp.eq.s32.totalorder %s19, 0
    %p82 = por %p80, %p81
    %p83 = scmp.ne.s32.totalorder %s71, %s72
    %p84 = scmp.eq.s32.totalorder %s20, 1
    %p85 = por %p83, %p84
    %p87 = scmp.ne.s32.totalorder %s72, %s86
    %p88 = scmp.eq.s32.totalorder %s20, 0
    %p89 = por %p87, %p88
    %s91 = sadd.s32 %s90, 1
    %p94 = scmp.eq.s32.totalorder %s14, 1
    %p95 = scmp.ne.s32.totalorder %s90, %s92
    %p96 = scmp.eq.s32.totalorder %s14, 0
    %p97 = por %p95, %p96
    %p98 = scmp.ne.s32.totalorder %s90, %s92
    %p99 = scmp.eq.s32.totalorder %s19, 1
    %p100 = por %p98, %p99
    %p101 = scmp.ne.s32.totalorder %s92, %s93
    %p102 = scmp.eq.s32.totalorder %s19, 0
    %p103 = por %p101, %p102
    %p104 = scmp.ne.s32.totalorder %s92, %s93
    %p105 = scmp.eq.s32.totalorder %s20, 1
    %p106 = por %p104, %p105
    %p108 = scmp.ne.s32.totalorder %s93, %s107
    %p109 = scmp.eq.s32.totalorder %s20, 0
    %p110 = por %p108, %p109
    %s112 = sadd.s32 %s111, 1
    %p115 = scmp.eq.s32.totalorder %s14, 1
    %p116 = scmp.ne.s32.totalorder %s111, %s113
    %p117 = scmp.eq.s32.totalorder %s14, 0
    %p118 = por %p116, %p117
    %p119 = scmp.ne.s32.totalorder %s111, %s113
    %p120 = scmp.eq.s32.totalorder %s19, 1
    %p121 = por %p119, %p120
    %p122 = scmp.ne.s32.totalorder %s113, %s114
    %p123 = scmp.eq.s32.totalorder %s19, 0
    %p124 = por %p122, %p123
    %p125 = scmp.ne.s32.totalorder %s113, %s114
    %p126 = scmp.eq.s32.totalorder %s20, 1
    %p127 = por %p125, %p126
    %p129 = scmp.ne.s32.totalorder %s114, %s128
    %p130 = scmp.eq.s32.totalorder %s20, 0
    %p131 = por %p129, %p130
    %s133 = sadd.s32 %s132, 1
    %p136 = scmp.eq.s32.totalorder %s14, 1
    %p137 = scmp.ne.s32.totalorder %s132, %s134
    %p138 = scmp.eq.s32.totalorder %s14, 0
    %p139 = por %p137, %p138
    %p140 = scmp.ne.s32.totalorder %s132, %s134
    %p141 = scmp.eq.s32.totalorder %s19, 1
    %p142 = por %p140, %p141
    %p143 = scmp.ne.s32.totalorder %s134, %s135
    %p144 = scmp.eq.s32.totalorder %s19, 0
    %p145 = por %p143, %p144
    %p146 = scmp.ne.s32.totalorder %s134, %s135
    %p147 = scmp.eq.s32.totalorder %s20, 1
    %p148 = por %p146, %p147
    %p150 = scmp.ne.s32.totalorder %s135, %s149
    %p151 = scmp.eq.s32.totalorder %s20, 0
    %p152 = por %p150, %p151
    %s154 = sadd.s32 %s153, 1
    %p157 = scmp.eq.s32.totalorder %s14, 1
    %p158 = scmp.ne.s32.totalorder %s153, %s155
    %p159 = scmp.eq.s32.totalorder %s14, 0
    %p160 = por %p158, %p159
    %p161 = scmp.ne.s32.totalorder %s153, %s155
    %p162 = scmp.eq.s32.totalorder %s19, 1
    %p163 = por %p161, %p162
    %p164 = scmp.ne.s32.totalorder %s155, %s156
    %p165 = scmp.eq.s32.totalorder %s19, 0
    %p166 = por %p164, %p165
    %p167 = scmp.ne.s32.totalorder %s155, %s156
    %p168 = scmp.eq.s32.totalorder %s20, 1
    %p169 = por %p167, %p168
    %p171 = scmp.ne.s32.totalorder %s156, %s170
    %p172 = scmp.eq.s32.totalorder %s20, 0
    %p173 = por %p171, %p172
    %s175 = sadd.s32 %s174, 1
    %p178 = scmp.eq.s32.totalorder %s14, 1
    %p179 = scmp.ne.s32.totalorder %s174, %s176
    %p180 = scmp.eq.s32.totalorder %s14, 0
    %p181 = por %p179, %p180
    %p182 = scmp.ne.s32.totalorder %s174, %s176
    %p183 = scmp.eq.s32.totalorder %s19, 1
    %p184 = por %p182, %p183
    %p185 = scmp.ne.s32.totalorder %s176, %s177
    %p186 = scmp.eq.s32.totalorder %s19, 0
    %p187 = por %p185, %p186
    %p188 = scmp.ne.s32.totalorder %s176, %s177
    %p189 = scmp.eq.s32.totalorder %s20, 1
    %p190 = por %p188, %p189
    %p192 = scmp.ne.s32.totalorder %s177, %s191
    %p193 = scmp.eq.s32.totalorder %s20, 0
    %p194 = por %p192, %p193
    %s195 = ssub.s32 %s14, %s21
    %p196 = scmp.eq.s32.totalorder %s195, 0
    %s198 = sadd.s32 %s197, 1
    %s199 = scalar_select %p196, %s197, %s198
    %p202 = pneg %p196
    %p203 = scmp.eq.s32.totalorder %s14, 1
    %p204 = por %p202, %p203
    %p205 = scmp.ne.s32.totalorder %s197, %s200
    %p206 = scmp.eq.s32.totalorder %s14, 0
    %p207 = por %p205, %p206
    %p208 = scmp.ne.s32.totalorder %s197, %s200
    %p209 = scmp.eq.s32.totalorder %s19, 1
    %p210 = por %p208, %p209
    %p211 = scmp.ne.s32.totalorder %s200, %s201
    %p212 = scmp.eq.s32.totalorder %s19, 0
    %p213 = por %p211, %p212
    %p214 = scmp.ne.s32.totalorder %s200, %s201
    %p215 = scmp.eq.s32.totalorder %s20, 1
    %p216 = por %p214, %p215
    %p218 = scmp.ne.s32.totalorder %s201, %s217
    %p219 = scmp.eq.s32.totalorder %s20, 0
    %p220 = por %p218, %p219
    %p221 = scmp.le.s32.totalorder 1, %s14
    %p222 = scmp.lt.s32.totalorder %s14, 3
    %p223 = pnand %p221, %p222
    %p224 = pneg %p223
    // Predicated region
    $region9: #{qnns_forward.1} parent=5 // pred_check
      _
    $region10: #{qnns_forward.1} parent=5 // pred_check_branch
      %226 = sbr.rel (%p223) target = $region12
    $region11: #{qnns_forward.1} parent=5 // pred_region
      %s227 = ssub.s32 %s14, 1
      // Predicated region
      $region13: #{qnns_forward.1} parent=11 // pred_check
        %p228 = pneg %p61
      $region14: #{qnns_forward.1} parent=11 // pred_check_branch
        %230 = sbr.rel (%p228) target = $region16
      $region15: #{qnns_forward.1} parent=11 // pred_region
        _
      $region16: #{qnns_forward.1} parent=11 // pred_fallthru
        _
      // Predicated region
      $region17: #{qnns_forward.1} parent=11 // pred_check
        %p231 = pneg %p82
      $region18: #{qnns_forward.1} parent=11 // pred_check_branch
        %233 = sbr.rel (%p231) target = $region20
      $region19: #{qnns_forward.1} parent=11 // pred_region
        _
      $region20: #{qnns_forward.1} parent=11 // pred_fallthru
        _
      // Predicated region
      $region21: #{qnns_forward.1} parent=11 // pred_check
        %p234 = pneg %p103
      $region22: #{qnns_forward.1} parent=11 // pred_check_branch
        %236 = sbr.rel (%p234) target = $region24
      $region23: #{qnns_forward.1} parent=11 // pred_region
        _
      $region24: #{qnns_forward.1} parent=11 // pred_fallthru
        _
      // Predicated region
      $region25: #{qnns_forward.1} parent=11 // pred_check
        %p237 = pneg %p124
      $region26: #{qnns_forward.1} parent=11 // pred_check_branch
        %239 = sbr.rel (%p237) target = $region28
      $region27: #{qnns_forward.1} parent=11 // pred_region
        _
      $region28: #{qnns_forward.1} parent=11 // pred_fallthru
        _
      // Predicated region
      $region29: #{qnns_forward.1} parent=11 // pred_check
        %p240 = pneg %p145
      $region30: #{qnns_forward.1} parent=11 // pred_check_branch
        %242 = sbr.rel (%p240) target = $region32
      $region31: #{qnns_forward.1} parent=11 // pred_region
        _
      $region32: #{qnns_forward.1} parent=11 // pred_fallthru
        _
      // Predicated region
      $region33: #{qnns_forward.1} parent=11 // pred_check
        %p243 = pneg %p166
      $region34: #{qnns_forward.1} parent=11 // pred_check_branch
        %245 = sbr.rel (%p243) target = $region36
      $region35: #{qnns_forward.1} parent=11 // pred_region
        _
      $region36: #{qnns_forward.1} parent=11 // pred_fallthru
        _
      // Predicated region
      $region37: #{qnns_forward.1} parent=11 // pred_check
        %p246 = pneg %p187
      $region38: #{qnns_forward.1} parent=11 // pred_check_branch
        %248 = sbr.rel (%p246) target = $region40
      $region39: #{qnns_forward.1} parent=11 // pred_region
        _
      $region40: #{qnns_forward.1} parent=11 // pred_fallthru
        _
    $region12: #{qnns_forward.1} parent=5 // pred_fallthru
      _
    %p249 = scmp.lt.s32.totalorder %s14, 2
    // Predicated region
    $region41: #{qnns_forward.1} parent=5 // pred_check
      %p250 = pneg %p249
    $region42: #{qnns_forward.1} parent=5 // pred_check_branch
      %252 = sbr.rel (%p250) target = $region44
    $region43: #{qnns_forward.1} parent=5 // pred_region
      // Predicated region
      $region45: #{qnns_forward.1} parent=43 // pred_check
        %p253 = pneg %p34
      $region46: #{qnns_forward.1} parent=43 // pred_check_branch
        %255 = sbr.rel (%p253) target = $region48
      $region47: #{qnns_forward.1} parent=43 // pred_region
        %p256 = scmp.lt.s32.totalorder %s14, 1
        %s257 = scalar_select %p256, %s14, 1
        %s258 = smul.addr %s257, 2
        %s259 = smul.addr %s258, 8
        %s260 = scalar_lea.vmem %s0, %s259
      $region48: #{qnns_forward.1} parent=43 // pred_fallthru
        _
    $region44: #{qnns_forward.1} parent=5 // pred_fallthru
      _
    %p261 = scmp.le.s32.totalorder 1, %s14
    %p262 = scmp.lt.s32.totalorder %s14, 3
    %p263 = pnand %p261, %p262
    %p264 = pneg %p263
    // Predicated region
    $region49: #{qnns_forward.1} parent=5 // pred_check
      _
    $region50: #{qnns_forward.1} parent=5 // pred_check_branch
      %266 = sbr.rel (%p263) target = $region52
    $region51: #{qnns_forward.1} parent=5 // pred_region
      %s267 = ssub.s32 %s14, 1
      %p268 = scmp.lt.s32.totalorder %s19, 1
      %s269 = scalar_select %p268, %s19, 1
      %s270 = smul.addr %s269, 2
      %s271 = smul.addr %s270, 8
      %s272 = scalar_lea.vmem %s0, %s271
      %p273 = pneg %p40
      %p274 = pneg %p37
      %p275 = pneg %p61
      %p276 = pneg %p58
      %p277 = pneg %p82
      %p278 = pneg %p79
      %p279 = pneg %p103
      %p280 = pneg %p100
      %p281 = pneg %p124
      %p282 = pneg %p121
      %p283 = pneg %p145
      %p284 = pneg %p142
      %p285 = pneg %p166
      %p286 = pneg %p163
      %p287 = pneg %p187
      %p288 = pneg %p184
      %p289 = pneg %p213
      %p290 = pneg %p210
      %p291 = scmp.lt.s32.totalorder %s19, 1
      %s292 = scalar_select %p291, %s19, 1
      %s293 = smul.addr %s292, 2
      %s294 = smul.addr %s293, 8
      %s295 = scalar_lea.vmem %s8, %s294
      %p296 = scmp.lt.s32.totalorder %s19, 1
      %s297 = scalar_select %p296, %s19, 1
      %s298 = smul.addr %s297, 2
      %s299 = smul.addr %s298, 8
      %s300 = scalar_lea.vmem %s0, %s299
      %p301 = scmp.lt.s32.totalorder %s19, 1
      %s302 = scalar_select %p301, %s19, 1
      %s303 = smul.addr %s302, 2
      %s304 = smul.addr %s303, 8
      %s305 = scalar_lea.vmem %s8, %s304
      %v306 = vld [vmem:[%s300] sm:$0xff]
      %v307 = vld [vmem:[%s300 + $0x8] sm:$0xff]
      %s308 = scalar_lea.vmem %s1, 20
      %v309 = vld [vmem:[%s308] ss:$8 sm:$0x3]
      %310 = vrot.lane.b32.xlu0 %v306, 17
      %v311 = vpop.permute.xlu0 %310
      %312 = vrot.lane.b32.xlu0 %v307, 17
      %v313 = vpop.permute.xlu0 %312
      %v314 = vlaneseq
      %v315 = vand.u32 %v314, 127
      %vm316 = vcmp.lt.s32.totalorder %v315, 17
      %v317 = vsel %vm316, %v311, %v313
      %v318 = vsel %vm316, %v313, %v311
      %s319 = scalar_lea.vmem %s1, 6
      %v320 = vld [vmem:[%s319] ss:$8 sm:$0x3]
      %v322 = vlaneseq
      %v323 = vshrl.u32 %v322, 7
      %v324 = vsub.s32 0, %v323
      %v325 = vrot.slane %v320, %v324
      %v326 = vlaneseq
      %v327 = vshrl.u32 %v326, 7
      %v328 = vsub.s32 1, %v327
      %v329 = vrot.slane %v320, %v328
      %v332 = vmul.f32 %v318, %v325
      %v333 = vmul.f32 %v317, %v329
      %334 = vrot.lane.b32.xlu0 %v306, 16
      %v335 = vpop.permute.xlu0 %334
      %336 = vrot.lane.b32.xlu0 %v307, 16
      %v337 = vpop.permute.xlu0 %336
      %vm338 = vcmp.lt.s32.totalorder %v315, 16
      %v339 = vsel %vm338, %v335, %v337
      %v340 = vsel %vm338, %v337, %v335
      %s341 = scalar_lea.vmem %s1, 7
      %v342 = vld [vmem:[%s341] ss:$8 sm:$0x3]
      %v344 = vlaneseq
      %v345 = vshrl.u32 %v344, 7
      %v346 = vsub.s32 0, %v345
      %v347 = vrot.slane %v342, %v346
      %v348 = vlaneseq
      %v349 = vshrl.u32 %v348, 7
      %v350 = vsub.s32 1, %v349
      %v351 = vrot.slane %v342, %v350
      %v354 = vmul.f32 %v340, %v347
      %v355 = vmul.f32 %v339, %v351
      %356 = vrot.lane.b32.xlu0 %v306, 15
      %v357 = vpop.permute.xlu0 %356
      %358 = vrot.lane.b32.xlu0 %v307, 15
      %v359 = vpop.permute.xlu0 %358
      %vm360 = vcmp.lt.s32.totalorder %v315, 15
      %v361 = vsel %vm360, %v357, %v359
      %v362 = vsel %vm360, %v359, %v357
      %s363 = scalar_lea.vmem %s1, 16
      %v364 = vld [vmem:[%s363] ss:$8 sm:$0x3]
      %v366 = vlaneseq
      %v367 = vshrl.u32 %v366, 7
      %v368 = vsub.s32 0, %v367
      %v369 = vrot.slane %v364, %v368
      %v370 = vlaneseq
      %v371 = vshrl.u32 %v370, 7
      %v372 = vsub.s32 1, %v371
      %v373 = vrot.slane %v364, %v372
      %v376 = vmul.f32 %v362, %v369
      %v377 = vmul.f32 %v361, %v373
      %378 = vrot.lane.b32.xlu0 %v306, 1
      %v379 = vpop.permute.xlu0 %378
      %380 = vrot.lane.b32.xlu0 %v307, 1
      %v381 = vpop.permute.xlu0 %380
      %vm382 = vcmp.lt.s32.totalorder %v315, 1
      %v383 = vsel %vm382, %v379, %v381
      %v384 = vsel %vm382, %v381, %v379
      %s385 = scalar_lea.vmem %s1, 19
      %v386 = vld [vmem:[%s385] ss:$8 sm:$0x3]
      %v388 = vlaneseq
      %v389 = vshrl.u32 %v388, 7
      %v390 = vsub.s32 0, %v389
      %v391 = vrot.slane %v386, %v390
      %v392 = vlaneseq
      %v393 = vshrl.u32 %v392, 7
      %v394 = vsub.s32 1, %v393
      %v395 = vrot.slane %v386, %v394
      %v398 = vmul.f32 %v384, %v391
      %v399 = vmul.f32 %v383, %v395
      %400 = vrot.lane.b32.xlu0 %v306, 127
      %v401 = vpop.permute.xlu0 %400
      %402 = vrot.lane.b32.xlu0 %v307, 127
      %v403 = vpop.permute.xlu0 %402
      %vm404 = vcmp.lt.s32.totalorder %v315, 127
      %v405 = vsel %vm404, %v401, %v403
      %v406 = vsel %vm404, %v403, %v401
      %s407 = scalar_lea.vmem %s1, 21
      %v408 = vld [vmem:[%s407] ss:$8 sm:$0x3]
      %v410 = vlaneseq
      %v411 = vshrl.u32 %v410, 7
      %v412 = vsub.s32 0, %v411
      %v413 = vrot.slane %v408, %v412
      %v414 = vlaneseq
      %v415 = vshrl.u32 %v414, 7
      %v416 = vsub.s32 1, %v415
      %v417 = vrot.slane %v408, %v416
      %v420 = vmul.f32 %v405, %v413
      %v421 = vmul.f32 %v406, %v417
      %422 = vrot.lane.b32.xlu0 %v306, 113
      %v423 = vpop.permute.xlu0 %422
      %424 = vrot.lane.b32.xlu0 %v307, 113
      %v425 = vpop.permute.xlu0 %424
      %vm426 = vcmp.lt.s32.totalorder %v315, 113
      %v427 = vsel %vm426, %v423, %v425
      %v428 = vsel %vm426, %v425, %v423
      %s429 = scalar_lea.vmem %s1, 32
      %v430 = vld [vmem:[%s429] ss:$8 sm:$0x3]
      %v432 = vlaneseq
      %v433 = vshrl.u32 %v432, 7
      %v434 = vsub.s32 0, %v433
      %v435 = vrot.slane %v430, %v434
      %v436 = vlaneseq
      %v437 = vshrl.u32 %v436, 7
      %v438 = vsub.s32 1, %v437
      %v439 = vrot.slane %v430, %v438
      %v442 = vmul.f32 %v427, %v435
      %v443 = vmul.f32 %v428, %v439
      %444 = vrot.lane.b32.xlu0 %v306, 112
      %v445 = vpop.permute.xlu0 %444
      %446 = vrot.lane.b32.xlu0 %v307, 112
      %v447 = vpop.permute.xlu0 %446
      %vm448 = vcmp.lt.s32.totalorder %v315, 112
      %v449 = vsel %vm448, %v445, %v447
      %v450 = vsel %vm448, %v447, %v445
      %s451 = scalar_lea.vmem %s1, 33
      %v452 = vld [vmem:[%s451] ss:$8 sm:$0x3]
      %v454 = vlaneseq
      %v455 = vshrl.u32 %v454, 7
      %v456 = vsub.s32 0, %v455
      %v457 = vrot.slane %v452, %v456
      %v458 = vlaneseq
      %v459 = vshrl.u32 %v458, 7
      %v460 = vsub.s32 1, %v459
      %v461 = vrot.slane %v452, %v460
      %v464 = vmul.f32 %v449, %v457
      %v465 = vmul.f32 %v450, %v461
      %466 = vrot.lane.b32.xlu0 %v306, 111
      %v467 = vpop.permute.xlu0 %466
      %468 = vrot.lane.b32.xlu0 %v307, 111
      %v469 = vpop.permute.xlu0 %468
      %vm470 = vcmp.lt.s32.totalorder %v315, 111
      %v471 = vsel %vm470, %v467, %v469
      %v472 = vsel %vm470, %v469, %v467
      %s473 = scalar_lea.vmem %s1, 34
      %v474 = vld [vmem:[%s473] ss:$8 sm:$0x3]
      %v476 = vlaneseq
      %v477 = vshrl.u32 %v476, 7
      %v478 = vsub.s32 0, %v477
      %v479 = vrot.slane %v474, %v478
      %v480 = vlaneseq
      %v481 = vshrl.u32 %v480, 7
      %v482 = vsub.s32 1, %v481
      %v483 = vrot.slane %v474, %v482
      %v486 = vmul.f32 %v471, %v479
      %v487 = vmul.f32 %v472, %v483
      %v489 = vlaneseq
      %v490 = vshrl.u32 %v489, 7
      %v491 = vsub.s32 0, %v490
      %v492 = vrot.slane %v309, %v491
      %v493 = vlaneseq
      %v494 = vshrl.u32 %v493, 7
      %v495 = vsub.s32 1, %v494
      %v496 = vrot.slane %v309, %v495
      %v497 = vld [vmem:[%s2] sm:$0xff]
      %v498 = vld [vmem:[%s2 + $0x8] sm:$0xff]
      %v499 = vld [vmem:[%s2 + $0x10] sm:$0xff]
      %v500 = vld [vmem:[%s2 + $0x18] sm:$0xff]
      %vm501 = vcmask 596992
      %v503 = vsel %vm501, %v497, 0
      %v506 = vsel %vm501, %v498, 0
      %v509 = vsel %vm501, %v499, 0
      %v512 = vsel %vm501, %v500, 0
      %vm514 = vcmask 1040384
      %v515 = vsel %vm514, %v492, 0
      %v517 = vsel %vm514, %v496, 0
      %519 = vmatprep.subr.mxu0 0.0
      %520 = vmatpush1.msra.mxu0 0.0
      %521 = vmatprep.subr.mxu0 0.0
      %522 = vmatpush1.msra.mxu0 0.0
      %523 = vmatprep.subr.mxu0 0.0
      %524 = vmatpush1.msra.mxu0 0.0
      %525 = vmatprep.subr.mxu0 0.0
      %526 = vmatpush1.msra.mxu0 0.0
      %527 = vmatprep.subr.mxu0 0.0
      %528 = vmatpush1.msra.mxu0 0.0
      %529 = vmatprep.subr.mxu0 0.0
      %530 = vmatpush1.msra.mxu0 0.0
      %531 = vmatprep.subr.mxu0 %v517
      %532 = vmatpush1.msra.mxu0 %v515
      %533 = vmatprep.subr.mxu0 %v487
      %534 = vmatpush1.msra.mxu0 %v486
      %535 = vmatprep.subr.mxu0 %v465
      %536 = vmatpush1.msra.mxu0 %v464
      %537 = vmatprep.subr.mxu0 %v443
      %538 = vmatpush1.msra.mxu0 %v442
      %539 = vmatprep.subr.mxu0 %v421
      %540 = vmatpush1.msra.mxu0 %v420
      %541 = vmatprep.subr.mxu0 %v307
      %542 = vmatpush1.msra.mxu0 %v306
      %543 = vmatprep.subr.mxu0 %v399
      %544 = vmatpush1.msra.mxu0 %v398
      %545 = vmatprep.subr.mxu0 %v377
      %546 = vmatpush1.msra.mxu0 %v376
      %547 = vmatprep.subr.mxu0 %v355
      %548 = vmatpush1.msra.mxu0 %v354
      %549 = vmatprep.subr.mxu0 %v333
      %550 = vmatpush1.msra.mxu0 %v332
      %551 = vmatprep.subr.mxu0 0.0
      %552 = vmatpush2.msra.mxu0 0.0
      %553 = vmatprep.subr.mxu0 0.0
      %554 = vmatpush2.msra.mxu0 0.0
      %555 = vmatprep.subr.mxu0 0.0
      %556 = vmatpush2.msra.mxu0 0.0
      %557 = vmatprep.subr.mxu0 0.0
      %558 = vmatpush2.msra.mxu0 0.0
      %559 = vmatprep.subr.mxu0 0.0
      %560 = vmatpush2.msra.mxu0 0.0
      %561 = vmatprep.subr.mxu0 0.0
      %562 = vmatpush2.msra.mxu0 0.0
      %563 = vmatprep.subr.mxu0 0.0
      %564 = vmatpush2.msra.mxu0 0.0
      %565 = vmatprep.subr.mxu0 0.0
      %566 = vmatpush2.msra.mxu0 0.0
      %567 = vmatprep.subr.mxu0 0.0
      %568 = vmatpush2.msra.mxu0 0.0
      %569 = vmatprep.subr.mxu0 0.0
      %570 = vmatpush2.msra.mxu0 0.0
      %571 = vmatprep.subr.mxu0 0.0
      %572 = vmatpush2.msra.mxu0 0.0
      %573 = vmatprep.subr.mxu0 0.0
      %574 = vmatpush2.msra.mxu0 0.0
      %575 = vmatprep.subr.mxu0 0.0
      %576 = vmatpush2.msra.mxu0 0.0
      %577 = vmatprep.subr.mxu0 0.0
      %578 = vmatpush2.msra.mxu0 0.0
      %579 = vmatprep.subr.mxu0 0.0
      %580 = vmatpush2.msra.mxu0 0.0
      %581 = vmatprep.subr.mxu0 0.0
      %582 = vmatpush2.msra.mxu0 0.0
      %583 = vmatprep.mubr.f32.mxu0 0.0
      %584 = vmatmul.mubr.f32.gmra.mxu0 %v503
      %v585 = vpop.f32.mrf.mxu0
      %v586 = vadd.f32 0.0, %v585
      %v587 = vpop.f32.mrf.mxu0
      %v588 = vadd.f32 0.0, %v587
      %589 = vmatprep.mubr.f32.mxu0 0.0
      %590 = vmatmul.mubr.f32.gmra.mxu0 %v506
      %v591 = vpop.f32.mrf.mxu0
      %v592 = vadd.f32 0.0, %v591
      %v593 = vpop.f32.mrf.mxu0
      %v594 = vadd.f32 0.0, %v593
      %595 = vmatprep.mubr.f32.mxu0 0.0
      %596 = vmatmul.mubr.f32.gmra.mxu0 %v509
      %v597 = vpop.f32.mrf.mxu0
      %v598 = vadd.f32 0.0, %v597
      %v599 = vpop.f32.mrf.mxu0
      %v600 = vadd.f32 0.0, %v599
      %601 = vmatprep.mubr.f32.mxu0 0.0
      %602 = vmatmul.mubr.f32.gmra.mxu0 %v512
      %v603 = vpop.f32.mrf.mxu0
      %v604 = vadd.f32 0.0, %v603
      %v605 = vpop.f32.mrf.mxu0
      %v606 = vadd.f32 0.0, %v605
      %607 = vdwg.mxu0
      %v608 = vmax.f32 %v586, 0.0
      %v609 = vmax.f32 %v588, 0.0
      %v610 = vmax.f32 %v592, 0.0
      %v611 = vmax.f32 %v594, 0.0
      %v612 = vmax.f32 %v598, 0.0
      %v613 = vmax.f32 %v600, 0.0
      %v614 = vmax.f32 %v604, 0.0
      %v615 = vmax.f32 %v606, 0.0
      %616 = vrot.lane.b32.xlu0 %v608, 17
      %v617 = vpop.permute.xlu0 %616
      %618 = vrot.lane.b32.xlu0 %v609, 17
      %v619 = vpop.permute.xlu0 %618
      %v620 = vsel %vm316, %v617, %v619
      %v621 = vsel %vm316, %v619, %v617
      %v622 = vmul.f32 %v621, %v325
      %v623 = vmul.f32 %v620, %v329
      %624 = vrot.lane.b32.xlu0 %v608, 16
      %v625 = vpop.permute.xlu0 %624
      %626 = vrot.lane.b32.xlu0 %v609, 16
      %v627 = vpop.permute.xlu0 %626
      %v628 = vsel %vm338, %v625, %v627
      %v629 = vsel %vm338, %v627, %v625
      %v630 = vmul.f32 %v629, %v347
      %v631 = vmul.f32 %v628, %v351
      %632 = vrot.lane.b32.xlu0 %v608, 15
      %v633 = vpop.permute.xlu0 %632
      %634 = vrot.lane.b32.xlu0 %v609, 15
      %v635 = vpop.permute.xlu0 %634
      %v636 = vsel %vm360, %v633, %v635
      %v637 = vsel %vm360, %v635, %v633
      %v638 = vmul.f32 %v637, %v369
      %v639 = vmul.f32 %v636, %v373
      %640 = vrot.lane.b32.xlu0 %v608, 1
      %v641 = vpop.permute.xlu0 %640
      %642 = vrot.lane.b32.xlu0 %v609, 1
      %v643 = vpop.permute.xlu0 %642
      %v644 = vsel %vm382, %v641, %v643
      %v645 = vsel %vm382, %v643, %v641
      %v646 = vmul.f32 %v645, %v391
      %v647 = vmul.f32 %v644, %v395
      %648 = vrot.lane.b32.xlu0 %v608, 127
      %v649 = vpop.permute.xlu0 %648
      %650 = vrot.lane.b32.xlu0 %v609, 127
      %v651 = vpop.permute.xlu0 %650
      %v652 = vsel %vm404, %v649, %v651
      %v653 = vsel %vm404, %v651, %v649
      %v654 = vmul.f32 %v652, %v413
      %v655 = vmul.f32 %v653, %v417
      %656 = vrot.lane.b32.xlu0 %v608, 113
      %v657 = vpop.permute.xlu0 %656
      %658 = vrot.lane.b32.xlu0 %v609, 113
      %v659 = vpop.permute.xlu0 %658
      %v660 = vsel %vm426, %v657, %v659
      %v661 = vsel %vm426, %v659, %v657
      %v662 = vmul.f32 %v660, %v435
      %v663 = vmul.f32 %v661, %v439
      %664 = vrot.lane.b32.xlu0 %v608, 112
      %v665 = vpop.permute.xlu0 %664
      %666 = vrot.lane.b32.xlu0 %v609, 112
      %v667 = vpop.permute.xlu0 %666
      %v668 = vsel %vm448, %v665, %v667
      %v669 = vsel %vm448, %v667, %v665
      %v670 = vmul.f32 %v668, %v457
      %v671 = vmul.f32 %v669, %v461
      %672 = vrot.lane.b32.xlu0 %v608, 111
      %v673 = vpop.permute.xlu0 %672
      %674 = vrot.lane.b32.xlu0 %v609, 111
      %v675 = vpop.permute.xlu0 %674
      %v676 = vsel %vm470, %v673, %v675
      %v677 = vsel %vm470, %v675, %v673
      %v678 = vmul.f32 %v676, %v479
      %v679 = vmul.f32 %v677, %v483
      %v680 = vld [vmem:[%s3] sm:$0xff]
      %v681 = vld [vmem:[%s3 + $0x8] sm:$0xff]
      %v683 = vsel %vm501, %v680, 0
      %v686 = vsel %vm501, %v681, 0
      %688 = vmatprep.subr.mxu0 0.0
      %689 = vmatpush1.msra.mxu0 0.0
      %690 = vmatprep.subr.mxu0 0.0
      %691 = vmatpush1.msra.mxu0 0.0
      %692 = vmatprep.subr.mxu0 0.0
      %693 = vmatpush1.msra.mxu0 0.0
      %694 = vmatprep.subr.mxu0 0.0
      %695 = vmatpush1.msra.mxu0 0.0
      %696 = vmatprep.subr.mxu0 0.0
      %697 = vmatpush1.msra.mxu0 0.0
      %698 = vmatprep.subr.mxu0 0.0
      %699 = vmatpush1.msra.mxu0 0.0
      %700 = vmatprep.subr.mxu0 %v517
      %701 = vmatpush1.msra.mxu0 %v515
      %702 = vmatprep.subr.mxu0 %v679
      %703 = vmatpush1.msra.mxu0 %v678
      %704 = vmatprep.subr.mxu0 %v671
      %705 = vmatpush1.msra.mxu0 %v670
      %706 = vmatprep.subr.mxu0 %v663
      %707 = vmatpush1.msra.mxu0 %v662
      %708 = vmatprep.subr.mxu0 %v655
      %709 = vmatpush1.msra.mxu0 %v654
      %710 = vmatprep.subr.mxu0 %v609
      %711 = vmatpush1.msra.mxu0 %v608
      %712 = vmatprep.subr.mxu0 %v647
      %713 = vmatpush1.msra.mxu0 %v646
      %714 = vmatprep.subr.mxu0 %v639
      %715 = vmatpush1.msra.mxu0 %v638
      %716 = vmatprep.subr.mxu0 %v631
      %717 = vmatpush1.msra.mxu0 %v630
      %718 = vmatprep.subr.mxu0 %v623
      %719 = vmatpush1.msra.mxu0 %v622
      %720 = vmatprep.subr.mxu0 0.0
      %721 = vmatpush2.msra.mxu0 0.0
      %722 = vmatprep.subr.mxu0 0.0
      %723 = vmatpush2.msra.mxu0 0.0
      %724 = vmatprep.subr.mxu0 0.0
      %725 = vmatpush2.msra.mxu0 0.0
      %726 = vmatprep.subr.mxu0 0.0
      %727 = vmatpush2.msra.mxu0 0.0
      %728 = vmatprep.subr.mxu0 0.0
      %729 = vmatpush2.msra.mxu0 0.0
      %730 = vmatprep.subr.mxu0 0.0
      %731 = vmatpush2.msra.mxu0 0.0
      %732 = vmatprep.subr.mxu0 0.0
      %733 = vmatpush2.msra.mxu0 0.0
      %734 = vmatprep.subr.mxu0 0.0
      %735 = vmatpush2.msra.mxu0 0.0
      %736 = vmatprep.subr.mxu0 0.0
      %737 = vmatpush2.msra.mxu0 0.0
      %738 = vmatprep.subr.mxu0 0.0
      %739 = vmatpush2.msra.mxu0 0.0
      %740 = vmatprep.subr.mxu0 0.0
      %741 = vmatpush2.msra.mxu0 0.0
      %742 = vmatprep.subr.mxu0 0.0
      %743 = vmatpush2.msra.mxu0 0.0
      %744 = vmatprep.subr.mxu0 0.0
      %745 = vmatpush2.msra.mxu0 0.0
      %746 = vmatprep.subr.mxu0 0.0
      %747 = vmatpush2.msra.mxu0 0.0
      %748 = vmatprep.subr.mxu0 0.0
      %749 = vmatpush2.msra.mxu0 0.0
      %750 = vmatprep.subr.mxu0 0.0
      %751 = vmatpush2.msra.mxu0 0.0
      %752 = vmatprep.mubr.f32.mxu0 0.0
      %753 = vmatmul.mubr.f32.gmra.mxu0 %v683
      %v754 = vpop.f32.mrf.mxu0
      %v755 = vadd.f32 0.0, %v754
      %v756 = vpop.f32.mrf.mxu0
      %v757 = vadd.f32 0.0, %v756
      %758 = vmatprep.mubr.f32.mxu0 0.0
      %759 = vmatmul.mubr.f32.gmra.mxu0 %v686
      %v760 = vpop.f32.mrf.mxu0
      %v761 = vadd.f32 0.0, %v760
      %v762 = vpop.f32.mrf.mxu0
      %v763 = vadd.f32 0.0, %v762
      %764 = vdwg.mxu0
      %v765 = vmax.f32 %v755, 0.0
      %v766 = vmax.f32 %v757, 0.0
      %v767 = vmax.f32 %v761, 0.0
      %v768 = vmax.f32 %v763, 0.0
      %769 = vrot.lane.b32.xlu0 %v767, 17
      %v770 = vpop.permute.xlu0 %769
      %771 = vrot.lane.b32.xlu0 %v768, 17
      %v772 = vpop.permute.xlu0 %771
      %v773 = vsel %vm316, %v770, %v772
      %v774 = vsel %vm316, %v772, %v770
      %v775 = vmul.f32 %v774, %v325
      %v776 = vmul.f32 %v773, %v329
      %v777 = vmax.f32 %v767, %v775
      %v778 = vmax.f32 %v768, %v776
      %779 = vrot.lane.b32.xlu0 %v767, 16
      %v780 = vpop.permute.xlu0 %779
      %781 = vrot.lane.b32.xlu0 %v768, 16
      %v782 = vpop.permute.xlu0 %781
      %v783 = vsel %vm338, %v780, %v782
      %v784 = vsel %vm338, %v782, %v780
      %v785 = vmul.f32 %v784, %v347
      %v786 = vmul.f32 %v783, %v351
      %v787 = vmax.f32 %v777, %v785
      %v788 = vmax.f32 %v778, %v786
      %789 = vrot.lane.b32.xlu0 %v767, 15
      %v790 = vpop.permute.xlu0 %789
      %791 = vrot.lane.b32.xlu0 %v768, 15
      %v792 = vpop.permute.xlu0 %791
      %v793 = vsel %vm360, %v790, %v792
      %v794 = vsel %vm360, %v792, %v790
      %v795 = vmul.f32 %v794, %v369
      %v796 = vmul.f32 %v793, %v373
      %v797 = vmax.f32 %v787, %v795
      %v798 = vmax.f32 %v788, %v796
      %799 = vrot.lane.b32.xlu0 %v767, 1
      %v800 = vpop.permute.xlu0 %799
      %801 = vrot.lane.b32.xlu0 %v768, 1
      %v802 = vpop.permute.xlu0 %801
      %v803 = vsel %vm382, %v800, %v802
      %v804 = vsel %vm382, %v802, %v800
      %v805 = vmul.f32 %v804, %v391
      %v806 = vmul.f32 %v803, %v395
      %v807 = vmax.f32 %v797, %v805
      %v808 = vmax.f32 %v798, %v806
      %809 = vrot.lane.b32.xlu0 %v767, 127
      %v810 = vpop.permute.xlu0 %809
      %811 = vrot.lane.b32.xlu0 %v768, 127
      %v812 = vpop.permute.xlu0 %811
      %v813 = vsel %vm404, %v810, %v812
      %v814 = vsel %vm404, %v812, %v810
      %v815 = vmul.f32 %v813, %v413
      %v816 = vmul.f32 %v814, %v417
      %v817 = vmax.f32 %v807, %v815
      %v818 = vmax.f32 %v808, %v816
      %819 = vrot.lane.b32.xlu0 %v767, 113
      %v820 = vpop.permute.xlu0 %819
      %821 = vrot.lane.b32.xlu0 %v768, 113
      %v822 = vpop.permute.xlu0 %821
      %v823 = vsel %vm426, %v820, %v822
      %v824 = vsel %vm426, %v822, %v820
      %v825 = vmul.f32 %v823, %v435
      %v826 = vmul.f32 %v824, %v439
      %v827 = vmax.f32 %v817, %v825
      %v828 = vmax.f32 %v818, %v826
      %829 = vrot.lane.b32.xlu0 %v767, 112
      %v830 = vpop.permute.xlu0 %829
      %831 = vrot.lane.b32.xlu0 %v768, 112
      %v832 = vpop.permute.xlu0 %831
      %v833 = vsel %vm448, %v830, %v832
      %v834 = vsel %vm448, %v832, %v830
      %v835 = vmul.f32 %v833, %v457
      %v836 = vmul.f32 %v834, %v461
      %v837 = vmax.f32 %v827, %v835
      %v838 = vmax.f32 %v828, %v836
      %839 = vrot.lane.b32.xlu0 %v767, 111
      %v840 = vpop.permute.xlu0 %839
      %841 = vrot.lane.b32.xlu0 %v768, 111
      %v842 = vpop.permute.xlu0 %841
      %v843 = vsel %vm470, %v840, %v842
      %v844 = vsel %vm470, %v842, %v840
      %v845 = vmul.f32 %v843, %v479
      %v846 = vmul.f32 %v844, %v483
      %v847 = vmax.f32 %v837, %v845
      %v848 = vmax.f32 %v838, %v846
      %849 = vrot.lane.b32.xlu0 %v765, 34
      %v850 = vpop.permute.xlu0 %849
      %851 = vrot.lane.b32.xlu0 %v766, 34
      %v852 = vpop.permute.xlu0 %851
      %vm853 = vcmp.lt.s32.totalorder %v315, 34
      %v854 = vsel %vm853, %v850, %v852
      %v855 = vsel %vm853, %v852, %v850
      %v856 = vld [vmem:[%s1] ss:$8 sm:$0x3]
      %v858 = vlaneseq
      %v859 = vshrl.u32 %v858, 7
      %v860 = vsub.s32 0, %v859
      %v861 = vrot.slane %v856, %v860
      %v862 = vlaneseq
      %v863 = vshrl.u32 %v862, 7
      %v864 = vsub.s32 1, %v863
      %v865 = vrot.slane %v856, %v864
      %v868 = vmul.f32 %v855, %v861
      %v869 = vmul.f32 %v854, %v865
      %870 = vrot.lane.b32.xlu0 %v765, 33
      %v871 = vpop.permute.xlu0 %870
      %872 = vrot.lane.b32.xlu0 %v766, 33
      %v873 = vpop.permute.xlu0 %872
      %vm874 = vcmp.lt.s32.totalorder %v315, 33
      %v875 = vsel %vm874, %v871, %v873
      %v876 = vsel %vm874, %v873, %v871
      %s877 = scalar_lea.vmem %s1, 1
      %v878 = vld [vmem:[%s877] ss:$8 sm:$0x3]
      %v880 = vlaneseq
      %v881 = vshrl.u32 %v880, 7
      %v882 = vsub.s32 0, %v881
      %v883 = vrot.slane %v878, %v882
      %v884 = vlaneseq
      %v885 = vshrl.u32 %v884, 7
      %v886 = vsub.s32 1, %v885
      %v887 = vrot.slane %v878, %v886
      %v890 = vmul.f32 %v876, %v883
      %v891 = vmul.f32 %v875, %v887
      %892 = vrot.lane.b32.xlu0 %v765, 32
      %v893 = vpop.permute.xlu0 %892
      %894 = vrot.lane.b32.xlu0 %v766, 32
      %v895 = vpop.permute.xlu0 %894
      %vm896 = vcmp.lt.s32.totalorder %v315, 32
      %v897 = vsel %vm896, %v893, %v895
      %v898 = vsel %vm896, %v895, %v893
      %s899 = scalar_lea.vmem %s1, 2
      %v900 = vld [vmem:[%s899] ss:$8 sm:$0x3]
      %v902 = vlaneseq
      %v903 = vshrl.u32 %v902, 7
      %v904 = vsub.s32 0, %v903
      %v905 = vrot.slane %v900, %v904
      %v906 = vlaneseq
      %v907 = vshrl.u32 %v906, 7
      %v908 = vsub.s32 1, %v907
      %v909 = vrot.slane %v900, %v908
      %v912 = vmul.f32 %v898, %v905
      %v913 = vmul.f32 %v897, %v909
      %914 = vrot.lane.b32.xlu0 %v765, 31
      %v915 = vpop.permute.xlu0 %914
      %916 = vrot.lane.b32.xlu0 %v766, 31
      %v917 = vpop.permute.xlu0 %916
      %vm918 = vcmp.lt.s32.totalorder %v315, 31
      %v919 = vsel %vm918, %v915, %v917
      %v920 = vsel %vm918, %v917, %v915
      %s921 = scalar_lea.vmem %s1, 3
      %v922 = vld [vmem:[%s921] ss:$8 sm:$0x3]
      %v924 = vlaneseq
      %v925 = vshrl.u32 %v924, 7
      %v926 = vsub.s32 0, %v925
      %v927 = vrot.slane %v922, %v926
      %v928 = vlaneseq
      %v929 = vshrl.u32 %v928, 7
      %v930 = vsub.s32 1, %v929
      %v931 = vrot.slane %v922, %v930
      %v934 = vmul.f32 %v920, %v927
      %v935 = vmul.f32 %v919, %v931
      %936 = vrot.lane.b32.xlu0 %v765, 30
      %v937 = vpop.permute.xlu0 %936
      %938 = vrot.lane.b32.xlu0 %v766, 30
      %v939 = vpop.permute.xlu0 %938
      %vm940 = vcmp.lt.s32.totalorder %v315, 30
      %v941 = vsel %vm940, %v937, %v939
      %v942 = vsel %vm940, %v939, %v937
      %s943 = scalar_lea.vmem %s1, 4
      %v944 = vld [vmem:[%s943] ss:$8 sm:$0x3]
      %v946 = vlaneseq
      %v947 = vshrl.u32 %v946, 7
      %v948 = vsub.s32 0, %v947
      %v949 = vrot.slane %v944, %v948
      %v950 = vlaneseq
      %v951 = vshrl.u32 %v950, 7
      %v952 = vsub.s32 1, %v951
      %v953 = vrot.slane %v944, %v952
      %v956 = vmul.f32 %v942, %v949
      %v957 = vmul.f32 %v941, %v953
      %958 = vrot.lane.b32.xlu0 %v765, 18
      %v959 = vpop.permute.xlu0 %958
      %960 = vrot.lane.b32.xlu0 %v766, 18
      %v961 = vpop.permute.xlu0 %960
      %vm962 = vcmp.lt.s32.totalorder %v315, 18
      %v963 = vsel %vm962, %v959, %v961
      %v964 = vsel %vm962, %v961, %v959
      %s965 = scalar_lea.vmem %s1, 5
      %v966 = vld [vmem:[%s965] ss:$8 sm:$0x3]
      %v968 = vlaneseq
      %v969 = vshrl.u32 %v968, 7
      %v970 = vsub.s32 0, %v969
      %v971 = vrot.slane %v966, %v970
      %v972 = vlaneseq
      %v973 = vshrl.u32 %v972, 7
      %v974 = vsub.s32 1, %v973
      %v975 = vrot.slane %v966, %v974
      %v978 = vmul.f32 %v964, %v971
      %v979 = vmul.f32 %v963, %v975
      %980 = vrot.lane.b32.xlu0 %v765, 17
      %v981 = vpop.permute.xlu0 %980
      %982 = vrot.lane.b32.xlu0 %v766, 17
      %v983 = vpop.permute.xlu0 %982
      %v984 = vsel %vm316, %v981, %v983
      %v985 = vsel %vm316, %v983, %v981
      %v986 = vmul.f32 %v985, %v325
      %v987 = vmul.f32 %v984, %v329
      %988 = vrot.lane.b32.xlu0 %v765, 16
      %v989 = vpop.permute.xlu0 %988
      %990 = vrot.lane.b32.xlu0 %v766, 16
      %v991 = vpop.permute.xlu0 %990
      %v992 = vsel %vm338, %v989, %v991
      %v993 = vsel %vm338, %v991, %v989
      %v994 = vmul.f32 %v993, %v347
      %v995 = vmul.f32 %v992, %v351
      %996 = vrot.lane.b32.xlu0 %v765, 15
      %v997 = vpop.permute.xlu0 %996
      %998 = vrot.lane.b32.xlu0 %v766, 15
      %v999 = vpop.permute.xlu0 %998
      %v1000 = vsel %vm360, %v997, %v999
      %v1001 = vsel %vm360, %v999, %v997
      %v1002 = vmul.f32 %v1001, %v369
      %v1003 = vmul.f32 %v1000, %v373
      %1004 = vrot.lane.b32.xlu0 %v765, 14
      %v1005 = vpop.permute.xlu0 %1004
      %1006 = vrot.lane.b32.xlu0 %v766, 14
      %v1007 = vpop.permute.xlu0 %1006
      %vm1008 = vcmp.lt.s32.totalorder %v315, 14
      %v1009 = vsel %vm1008, %v1005, %v1007
      %v1010 = vsel %vm1008, %v1007, %v1005
      %s1011 = scalar_lea.vmem %s1, 17
      %v1012 = vld [vmem:[%s1011] ss:$8 sm:$0x3]
      %v1014 = vlaneseq
      %v1015 = vshrl.u32 %v1014, 7
      %v1016 = vsub.s32 0, %v1015
      %v1017 = vrot.slane %v1012, %v1016
      %v1018 = vlaneseq
      %v1019 = vshrl.u32 %v1018, 7
      %v1020 = vsub.s32 1, %v1019
      %v1021 = vrot.slane %v1012, %v1020
      %v1024 = vmul.f32 %v1010, %v1017
      %v1025 = vmul.f32 %v1009, %v1021
      %1026 = vrot.lane.b32.xlu0 %v765, 2
      %v1027 = vpop.permute.xlu0 %1026
      %1028 = vrot.lane.b32.xlu0 %v766, 2
      %v1029 = vpop.permute.xlu0 %1028
      %vm1030 = vcmp.lt.s32.totalorder %v315, 2
      %v1031 = vsel %vm1030, %v1027, %v1029
      %v1032 = vsel %vm1030, %v1029, %v1027
      %s1033 = scalar_lea.vmem %s1, 18
      %v1034 = vld [vmem:[%s1033] ss:$8 sm:$0x3]
      %v1036 = vlaneseq
      %v1037 = vshrl.u32 %v1036, 7
      %v1038 = vsub.s32 0, %v1037
      %v1039 = vrot.slane %v1034, %v1038
      %v1040 = vlaneseq
      %v1041 = vshrl.u32 %v1040, 7
      %v1042 = vsub.s32 1, %v1041
      %v1043 = vrot.slane %v1034, %v1042
      %v1046 = vmul.f32 %v1032, %v1039
      %v1047 = vmul.f32 %v1031, %v1043
      %1048 = vrot.lane.b32.xlu0 %v765, 1
      %v1049 = vpop.permute.xlu0 %1048
      %1050 = vrot.lane.b32.xlu0 %v766, 1
      %v1051 = vpop.permute.xlu0 %1050
      %v1052 = vsel %vm382, %v1049, %v1051
      %v1053 = vsel %vm382, %v1051, %v1049
      %v1054 = vmul.f32 %v1053, %v391
      %v1055 = vmul.f32 %v1052, %v395
      %1056 = vrot.lane.b32.xlu0 %v765, 127
      %v1057 = vpop.permute.xlu0 %1056
      %1058 = vrot.lane.b32.xlu0 %v766, 127
      %v1059 = vpop.permute.xlu0 %1058
      %v1060 = vsel %vm404, %v1057, %v1059
      %v1061 = vsel %vm404, %v1059, %v1057
      %v1062 = vmul.f32 %v1060, %v413
      %v1063 = vmul.f32 %v1061, %v417
      %1064 = vrot.lane.b32.xlu0 %v765, 126
      %v1065 = vpop.permute.xlu0 %1064
      %1066 = vrot.lane.b32.xlu0 %v766, 126
      %v1067 = vpop.permute.xlu0 %1066
      %vm1068 = vcmp.lt.s32.totalorder %v315, 126
      %v1069 = vsel %vm1068, %v1065, %v1067
      %v1070 = vsel %vm1068, %v1067, %v1065
      %s1071 = scalar_lea.vmem %s1, 22
      %v1072 = vld [vmem:[%s1071] ss:$8 sm:$0x3]
      %v1074 = vlaneseq
      %v1075 = vshrl.u32 %v1074, 7
      %v1076 = vsub.s32 0, %v1075
      %v1077 = vrot.slane %v1072, %v1076
      %v1078 = vlaneseq
      %v1079 = vshrl.u32 %v1078, 7
      %v1080 = vsub.s32 1, %v1079
      %v1081 = vrot.slane %v1072, %v1080
      %v1084 = vmul.f32 %v1069, %v1077
      %v1085 = vmul.f32 %v1070, %v1081
      %1086 = vrot.lane.b32.xlu0 %v765, 114
      %v1087 = vpop.permute.xlu0 %1086
      %1088 = vrot.lane.b32.xlu0 %v766, 114
      %v1089 = vpop.permute.xlu0 %1088
      %vm1090 = vcmp.lt.s32.totalorder %v315, 114
      %v1091 = vsel %vm1090, %v1087, %v1089
      %v1092 = vsel %vm1090, %v1089, %v1087
      %s1093 = scalar_lea.vmem %s1, 23
      %v1094 = vld [vmem:[%s1093] ss:$8 sm:$0x3]
      %v1096 = vlaneseq
      %v1097 = vshrl.u32 %v1096, 7
      %v1098 = vsub.s32 0, %v1097
      %v1099 = vrot.slane %v1094, %v1098
      %v1100 = vlaneseq
      %v1101 = vshrl.u32 %v1100, 7
      %v1102 = vsub.s32 1, %v1101
      %v1103 = vrot.slane %v1094, %v1102
      %v1106 = vmul.f32 %v1091, %v1099
      %v1107 = vmul.f32 %v1092, %v1103
      %1108 = vrot.lane.b32.xlu0 %v765, 113
      %v1109 = vpop.permute.xlu0 %1108
      %1110 = vrot.lane.b32.xlu0 %v766, 113
      %v1111 = vpop.permute.xlu0 %1110
      %v1112 = vsel %vm426, %v1109, %v1111
      %v1113 = vsel %vm426, %v1111, %v1109
      %v1114 = vmul.f32 %v1112, %v435
      %v1115 = vmul.f32 %v1113, %v439
      %1116 = vrot.lane.b32.xlu0 %v765, 112
      %v1117 = vpop.permute.xlu0 %1116
      %1118 = vrot.lane.b32.xlu0 %v766, 112
      %v1119 = vpop.permute.xlu0 %1118
      %v1120 = vsel %vm448, %v1117, %v1119
      %v1121 = vsel %vm448, %v1119, %v1117
      %v1122 = vmul.f32 %v1120, %v457
      %v1123 = vmul.f32 %v1121, %v461
      %1124 = vrot.lane.b32.xlu0 %v765, 111
      %v1125 = vpop.permute.xlu0 %1124
      %1126 = vrot.lane.b32.xlu0 %v766, 111
      %v1127 = vpop.permute.xlu0 %1126
      %v1128 = vsel %vm470, %v1125, %v1127
      %v1129 = vsel %vm470, %v1127, %v1125
      %v1130 = vmul.f32 %v1128, %v479
      %v1131 = vmul.f32 %v1129, %v483
      %1132 = vrot.lane.b32.xlu0 %v765, 110
      %v1133 = vpop.permute.xlu0 %1132
      %1134 = vrot.lane.b32.xlu0 %v766, 110
      %v1135 = vpop.permute.xlu0 %1134
      %vm1136 = vcmp.lt.s32.totalorder %v315, 110
      %v1137 = vsel %vm1136, %v1133, %v1135
      %v1138 = vsel %vm1136, %v1135, %v1133
      %s1139 = scalar_lea.vmem %s1, 35
      %v1140 = vld [vmem:[%s1139] ss:$8 sm:$0x3]
      %v1142 = vlaneseq
      %v1143 = vshrl.u32 %v1142, 7
      %v1144 = vsub.s32 0, %v1143
      %v1145 = vrot.slane %v1140, %v1144
      %v1146 = vlaneseq
      %v1147 = vshrl.u32 %v1146, 7
      %v1148 = vsub.s32 1, %v1147
      %v1149 = vrot.slane %v1140, %v1148
      %v1152 = vmul.f32 %v1137, %v1145
      %v1153 = vmul.f32 %v1138, %v1149
      %1154 = vrot.lane.b32.xlu0 %v765, 98
      %v1155 = vpop.permute.xlu0 %1154
      %1156 = vrot.lane.b32.xlu0 %v766, 98
      %v1157 = vpop.permute.xlu0 %1156
      %vm1158 = vcmp.lt.s32.totalorder %v315, 98
      %v1159 = vsel %vm1158, %v1155, %v1157
      %v1160 = vsel %vm1158, %v1157, %v1155
      %s1161 = scalar_lea.vmem %s1, 36
      %v1162 = vld [vmem:[%s1161] ss:$8 sm:$0x3]
      %v1164 = vlaneseq
      %v1165 = vshrl.u32 %v1164, 7
      %v1166 = vsub.s32 0, %v1165
      %v1167 = vrot.slane %v1162, %v1166
      %v1168 = vlaneseq
      %v1169 = vshrl.u32 %v1168, 7
      %v1170 = vsub.s32 1, %v1169
      %v1171 = vrot.slane %v1162, %v1170
      %v1174 = vmul.f32 %v1159, %v1167
      %v1175 = vmul.f32 %v1160, %v1171
      %1176 = vrot.lane.b32.xlu0 %v765, 97
      %v1177 = vpop.permute.xlu0 %1176
      %1178 = vrot.lane.b32.xlu0 %v766, 97
      %v1179 = vpop.permute.xlu0 %1178
      %vm1180 = vcmp.lt.s32.totalorder %v315, 97
      %v1181 = vsel %vm1180, %v1177, %v1179
      %v1182 = vsel %vm1180, %v1179, %v1177
      %s1183 = scalar_lea.vmem %s1, 37
      %v1184 = vld [vmem:[%s1183] ss:$8 sm:$0x3]
      %v1186 = vlaneseq
      %v1187 = vshrl.u32 %v1186, 7
      %v1188 = vsub.s32 0, %v1187
      %v1189 = vrot.slane %v1184, %v1188
      %v1190 = vlaneseq
      %v1191 = vshrl.u32 %v1190, 7
      %v1192 = vsub.s32 1, %v1191
      %v1193 = vrot.slane %v1184, %v1192
      %v1196 = vmul.f32 %v1181, %v1189
      %v1197 = vmul.f32 %v1182, %v1193
      %1198 = vrot.lane.b32.xlu0 %v765, 96
      %v1199 = vpop.permute.xlu0 %1198
      %1200 = vrot.lane.b32.xlu0 %v766, 96
      %v1201 = vpop.permute.xlu0 %1200
      %vm1202 = vcmp.lt.s32.totalorder %v315, 96
      %v1203 = vsel %vm1202, %v1199, %v1201
      %v1204 = vsel %vm1202, %v1201, %v1199
      %s1205 = scalar_lea.vmem %s1, 38
      %v1206 = vld [vmem:[%s1205] ss:$8 sm:$0x3]
      %v1208 = vlaneseq
      %v1209 = vshrl.u32 %v1208, 7
      %v1210 = vsub.s32 0, %v1209
      %v1211 = vrot.slane %v1206, %v1210
      %v1212 = vlaneseq
      %v1213 = vshrl.u32 %v1212, 7
      %v1214 = vsub.s32 1, %v1213
      %v1215 = vrot.slane %v1206, %v1214
      %v1218 = vmul.f32 %v1203, %v1211
      %v1219 = vmul.f32 %v1204, %v1215
      %1220 = vrot.lane.b32.xlu0 %v765, 95
      %v1221 = vpop.permute.xlu0 %1220
      %1222 = vrot.lane.b32.xlu0 %v766, 95
      %v1223 = vpop.permute.xlu0 %1222
      %vm1224 = vcmp.lt.s32.totalorder %v315, 95
      %v1225 = vsel %vm1224, %v1221, %v1223
      %v1226 = vsel %vm1224, %v1223, %v1221
      %s1227 = scalar_lea.vmem %s1, 39
      %v1228 = vld [vmem:[%s1227] ss:$8 sm:$0x3]
      %v1230 = vlaneseq
      %v1231 = vshrl.u32 %v1230, 7
      %v1232 = vsub.s32 0, %v1231
      %v1233 = vrot.slane %v1228, %v1232
      %v1234 = vlaneseq
      %v1235 = vshrl.u32 %v1234, 7
      %v1236 = vsub.s32 1, %v1235
      %v1237 = vrot.slane %v1228, %v1236
      %v1240 = vmul.f32 %v1225, %v1233
      %v1241 = vmul.f32 %v1226, %v1237
      %1242 = vrot.lane.b32.xlu0 %v765, 94
      %v1243 = vpop.permute.xlu0 %1242
      %1244 = vrot.lane.b32.xlu0 %v766, 94
      %v1245 = vpop.permute.xlu0 %1244
      %vm1246 = vcmp.lt.s32.totalorder %v315, 94
      %v1247 = vsel %vm1246, %v1243, %v1245
      %v1248 = vsel %vm1246, %v1245, %v1243
      %s1249 = scalar_lea.vmem %s1, 48
      %v1250 = vld [vmem:[%s1249] ss:$8 sm:$0x3]
      %v1252 = vlaneseq
      %v1253 = vshrl.u32 %v1252, 7
      %v1254 = vsub.s32 0, %v1253
      %v1255 = vrot.slane %v1250, %v1254
      %v1256 = vlaneseq
      %v1257 = vshrl.u32 %v1256, 7
      %v1258 = vsub.s32 1, %v1257
      %v1259 = vrot.slane %v1250, %v1258
      %v1262 = vmul.f32 %v1247, %v1255
      %v1263 = vmul.f32 %v1248, %v1259
      %v1264 = vld [vmem:[%s4] sm:$0xff]
      %v1265 = vld [vmem:[%s4 + $0x8] sm:$0xff]
      %v1267 = vsel %vm501, %v1265, 0
      %1269 = vmatprep.subr.mxu0 %v1107
      %1270 = vmatpush1.msra.mxu0 %v1106
      %1271 = vmatprep.subr.mxu0 %v1085
      %1272 = vmatpush1.msra.mxu0 %v1084
      %1273 = vmatprep.subr.mxu0 %v1063
      %1274 = vmatpush1.msra.mxu0 %v1062
      %1275 = vmatprep.subr.mxu0 %v766
      %1276 = vmatpush1.msra.mxu0 %v765
      %1277 = vmatprep.subr.mxu0 %v1055
      %1278 = vmatpush1.msra.mxu0 %v1054
      %1279 = vmatprep.subr.mxu0 %v1047
      %1280 = vmatpush1.msra.mxu0 %v1046
      %1281 = vmatprep.subr.mxu0 %v1025
      %1282 = vmatpush1.msra.mxu0 %v1024
      %1283 = vmatprep.subr.mxu0 %v1003
      %1284 = vmatpush1.msra.mxu0 %v1002
      %1285 = vmatprep.subr.mxu0 %v995
      %1286 = vmatpush1.msra.mxu0 %v994
      %1287 = vmatprep.subr.mxu0 %v987
      %1288 = vmatpush1.msra.mxu0 %v986
      %1289 = vmatprep.subr.mxu0 %v979
      %1290 = vmatpush1.msra.mxu0 %v978
      %1291 = vmatprep.subr.mxu0 %v957
      %1292 = vmatpush1.msra.mxu0 %v956
      %1293 = vmatprep.subr.mxu0 %v935
      %1294 = vmatpush1.msra.mxu0 %v934
      %1295 = vmatprep.subr.mxu0 %v913
      %1296 = vmatpush1.msra.mxu0 %v912
      %1297 = vmatprep.subr.mxu0 %v891
      %1298 = vmatpush1.msra.mxu0 %v890
      %1299 = vmatprep.subr.mxu0 %v869
      %1300 = vmatpush1.msra.mxu0 %v868
      %1301 = vmatprep.subr.mxu0 0.0
      %1302 = vmatpush2.msra.mxu0 0.0
      %1303 = vmatprep.subr.mxu0 0.0
      %1304 = vmatpush2.msra.mxu0 0.0
      %1305 = vmatprep.subr.mxu0 0.0
      %1306 = vmatpush2.msra.mxu0 0.0
      %1307 = vmatprep.subr.mxu0 0.0
      %1308 = vmatpush2.msra.mxu0 0.0
      %1309 = vmatprep.subr.mxu0 0.0
      %1310 = vmatpush2.msra.mxu0 0.0
      %1311 = vmatprep.subr.mxu0 0.0
      %1312 = vmatpush2.msra.mxu0 0.0
      %1313 = vmatprep.subr.mxu0 %v517
      %1314 = vmatpush2.msra.mxu0 %v515
      %1315 = vmatprep.subr.mxu0 %v1263
      %1316 = vmatpush2.msra.mxu0 %v1262
      %1317 = vmatprep.subr.mxu0 %v1241
      %1318 = vmatpush2.msra.mxu0 %v1240
      %1319 = vmatprep.subr.mxu0 %v1219
      %1320 = vmatpush2.msra.mxu0 %v1218
      %1321 = vmatprep.subr.mxu0 %v1197
      %1322 = vmatpush2.msra.mxu0 %v1196
      %1323 = vmatprep.subr.mxu0 %v1175
      %1324 = vmatpush2.msra.mxu0 %v1174
      %1325 = vmatprep.subr.mxu0 %v1153
      %1326 = vmatpush2.msra.mxu0 %v1152
      %1327 = vmatprep.subr.mxu0 %v1131
      %1328 = vmatpush2.msra.mxu0 %v1130
      %1329 = vmatprep.subr.mxu0 %v1123
      %1330 = vmatpush2.msra.mxu0 %v1122
      %1331 = vmatprep.subr.mxu0 %v1115
      %1332 = vmatpush2.msra.mxu0 %v1114
      %1333 = vmatprep.mubr.f32.mxu0 %v1267
      %1334 = vmatmul.mubr.f32.gmra.mxu0 %v1264
      %v1335 = vpop.f32.mrf.mxu0
      %v1336 = vadd.f32 0.0, %v1335
      %v1337 = vpop.f32.mrf.mxu0
      %v1338 = vadd.f32 0.0, %v1337
      %1339 = vdwg.mxu0
      %v1340 = vmax.f32 %v1336, 0.0
      %v1341 = vmax.f32 %v1338, 0.0
      %v1342 = vadd.f32 %v1340, %v610
      %v1343 = vadd.f32 %v1341, %v611
      %1344 = vrot.lane.b32.xlu0 %v610, 17
      %v1345 = vpop.permute.xlu0 %1344
      %1346 = vrot.lane.b32.xlu0 %v611, 17
      %v1347 = vpop.permute.xlu0 %1346
      %v1348 = vsel %vm316, %v1345, %v1347
      %v1349 = vsel %vm316, %v1347, %v1345
      %v1350 = vmul.f32 %v1349, %v325
      %v1351 = vmul.f32 %v1348, %v329
      %v1352 = vmax.f32 %v610, %v1350
      %v1353 = vmax.f32 %v611, %v1351
      %1354 = vrot.lane.b32.xlu0 %v610, 16
      %v1355 = vpop.permute.xlu0 %1354
      %1356 = vrot.lane.b32.xlu0 %v611, 16
      %v1357 = vpop.permute.xlu0 %1356
      %v1358 = vsel %vm338, %v1355, %v1357
      %v1359 = vsel %vm338, %v1357, %v1355
      %v1360 = vmul.f32 %v1359, %v347
      %v1361 = vmul.f32 %v1358, %v351
      %v1362 = vmax.f32 %v1352, %v1360
      %v1363 = vmax.f32 %v1353, %v1361
      %1364 = vrot.lane.b32.xlu0 %v610, 15
      %v1365 = vpop.permute.xlu0 %1364
      %1366 = vrot.lane.b32.xlu0 %v611, 15
      %v1367 = vpop.permute.xlu0 %1366
      %v1368 = vsel %vm360, %v1365, %v1367
      %v1369 = vsel %vm360, %v1367, %v1365
      %v1370 = vmul.f32 %v1369, %v369
      %v1371 = vmul.f32 %v1368, %v373
      %v1372 = vmax.f32 %v1362, %v1370
      %v1373 = vmax.f32 %v1363, %v1371
      %1374 = vrot.lane.b32.xlu0 %v610, 1
      %v1375 = vpop.permute.xlu0 %1374
      %1376 = vrot.lane.b32.xlu0 %v611, 1
      %v1377 = vpop.permute.xlu0 %1376
      %v1378 = vsel %vm382, %v1375, %v1377
      %v1379 = vsel %vm382, %v1377, %v1375
      %v1380 = vmul.f32 %v1379, %v391
      %v1381 = vmul.f32 %v1378, %v395
      %v1382 = vmax.f32 %v1372, %v1380
      %v1383 = vmax.f32 %v1373, %v1381
      %1384 = vrot.lane.b32.xlu0 %v610, 127
      %v1385 = vpop.permute.xlu0 %1384
      %1386 = vrot.lane.b32.xlu0 %v611, 127
      %v1387 = vpop.permute.xlu0 %1386
      %v1388 = vsel %vm404, %v1385, %v1387
      %v1389 = vsel %vm404, %v1387, %v1385
      %v1390 = vmul.f32 %v1388, %v413
      %v1391 = vmul.f32 %v1389, %v417
      %v1392 = vmax.f32 %v1382, %v1390
      %v1393 = vmax.f32 %v1383, %v1391
      %1394 = vrot.lane.b32.xlu0 %v610, 113
      %v1395 = vpop.permute.xlu0 %1394
      %1396 = vrot.lane.b32.xlu0 %v611, 113
      %v1397 = vpop.permute.xlu0 %1396
      %v1398 = vsel %vm426, %v1395, %v1397
      %v1399 = vsel %vm426, %v1397, %v1395
      %v1400 = vmul.f32 %v1398, %v435
      %v1401 = vmul.f32 %v1399, %v439
      %v1402 = vmax.f32 %v1392, %v1400
      %v1403 = vmax.f32 %v1393, %v1401
      %1404 = vrot.lane.b32.xlu0 %v610, 112
      %v1405 = vpop.permute.xlu0 %1404
      %1406 = vrot.lane.b32.xlu0 %v611, 112
      %v1407 = vpop.permute.xlu0 %1406
      %v1408 = vsel %vm448, %v1405, %v1407
      %v1409 = vsel %vm448, %v1407, %v1405
      %v1410 = vmul.f32 %v1408, %v457
      %v1411 = vmul.f32 %v1409, %v461
      %v1412 = vmax.f32 %v1402, %v1410
      %v1413 = vmax.f32 %v1403, %v1411
      %1414 = vrot.lane.b32.xlu0 %v610, 111
      %v1415 = vpop.permute.xlu0 %1414
      %1416 = vrot.lane.b32.xlu0 %v611, 111
      %v1417 = vpop.permute.xlu0 %1416
      %v1418 = vsel %vm470, %v1415, %v1417
      %v1419 = vsel %vm470, %v1417, %v1415
      %v1420 = vmul.f32 %v1418, %v479
      %v1421 = vmul.f32 %v1419, %v483
      %v1422 = vmax.f32 %v1412, %v1420
      %v1423 = vmax.f32 %v1413, %v1421
      %v1424 = vadd.f32 %v610, %v612
      %v1425 = vadd.f32 %v611, %v613
      %1426 = vrot.lane.b32.xlu0 %v1424, 17
      %v1427 = vpop.permute.xlu0 %1426
      %1428 = vrot.lane.b32.xlu0 %v1425, 17
      %v1429 = vpop.permute.xlu0 %1428
      %v1430 = vsel %vm316, %v1427, %v1429
      %v1431 = vsel %vm316, %v1429, %v1427
      %v1432 = vmul.f32 %v1431, %v325
      %v1433 = vmul.f32 %v1430, %v329
      %1434 = vrot.lane.b32.xlu0 %v1424, 16
      %v1435 = vpop.permute.xlu0 %1434
      %1436 = vrot.lane.b32.xlu0 %v1425, 16
      %v1437 = vpop.permute.xlu0 %1436
      %v1438 = vsel %vm338, %v1435, %v1437
      %v1439 = vsel %vm338, %v1437, %v1435
      %v1440 = vmul.f32 %v1439, %v347
      %v1441 = vmul.f32 %v1438, %v351
      %1442 = vrot.lane.b32.xlu0 %v1424, 15
      %v1443 = vpop.permute.xlu0 %1442
      %1444 = vrot.lane.b32.xlu0 %v1425, 15
      %v1445 = vpop.permute.xlu0 %1444
      %v1446 = vsel %vm360, %v1443, %v1445
      %v1447 = vsel %vm360, %v1445, %v1443
      %v1448 = vmul.f32 %v1447, %v369
      %v1449 = vmul.f32 %v1446, %v373
      %1450 = vrot.lane.b32.xlu0 %v1424, 1
      %v1451 = vpop.permute.xlu0 %1450
      %1452 = vrot.lane.b32.xlu0 %v1425, 1
      %v1453 = vpop.permute.xlu0 %1452
      %v1454 = vsel %vm382, %v1451, %v1453
      %v1455 = vsel %vm382, %v1453, %v1451
      %v1456 = vmul.f32 %v1455, %v391
      %v1457 = vmul.f32 %v1454, %v395
      %1458 = vrot.lane.b32.xlu0 %v1424, 127
      %v1459 = vpop.permute.xlu0 %1458
      %1460 = vrot.lane.b32.xlu0 %v1425, 127
      %v1461 = vpop.permute.xlu0 %1460
      %v1462 = vsel %vm404, %v1459, %v1461
      %v1463 = vsel %vm404, %v1461, %v1459
      %v1464 = vmul.f32 %v1462, %v413
      %v1465 = vmul.f32 %v1463, %v417
      %1466 = vrot.lane.b32.xlu0 %v1424, 113
      %v1467 = vpop.permute.xlu0 %1466
      %1468 = vrot.lane.b32.xlu0 %v1425, 113
      %v1469 = vpop.permute.xlu0 %1468
      %v1470 = vsel %vm426, %v1467, %v1469
      %v1471 = vsel %vm426, %v1469, %v1467
      %v1472 = vmul.f32 %v1470, %v435
      %v1473 = vmul.f32 %v1471, %v439
      %1474 = vrot.lane.b32.xlu0 %v1424, 112
      %v1475 = vpop.permute.xlu0 %1474
      %1476 = vrot.lane.b32.xlu0 %v1425, 112
      %v1477 = vpop.permute.xlu0 %1476
      %v1478 = vsel %vm448, %v1475, %v1477
      %v1479 = vsel %vm448, %v1477, %v1475
      %v1480 = vmul.f32 %v1478, %v457
      %v1481 = vmul.f32 %v1479, %v461
      %1482 = vrot.lane.b32.xlu0 %v1424, 111
      %v1483 = vpop.permute.xlu0 %1482
      %1484 = vrot.lane.b32.xlu0 %v1425, 111
      %v1485 = vpop.permute.xlu0 %1484
      %v1486 = vsel %vm470, %v1483, %v1485
      %v1487 = vsel %vm470, %v1485, %v1483
      %v1488 = vmul.f32 %v1486, %v479
      %v1489 = vmul.f32 %v1487, %v483
      %v1490 = vld [vmem:[%s5] sm:$0xff]
      %v1492 = vsel %vm501, %v1490, 0
      %1494 = vmatprep.subr.mxu0 0.0
      %1495 = vmatpush1.msra.mxu0 0.0
      %1496 = vmatprep.subr.mxu0 0.0
      %1497 = vmatpush1.msra.mxu0 0.0
      %1498 = vmatprep.subr.mxu0 0.0
      %1499 = vmatpush1.msra.mxu0 0.0
      %1500 = vmatprep.subr.mxu0 0.0
      %1501 = vmatpush1.msra.mxu0 0.0
      %1502 = vmatprep.subr.mxu0 0.0
      %1503 = vmatpush1.msra.mxu0 0.0
      %1504 = vmatprep.subr.mxu0 0.0
      %1505 = vmatpush1.msra.mxu0 0.0
      %1506 = vmatprep.subr.mxu0 %v517
      %1507 = vmatpush1.msra.mxu0 %v515
      %1508 = vmatprep.subr.mxu0 %v1489
      %1509 = vmatpush1.msra.mxu0 %v1488
      %1510 = vmatprep.subr.mxu0 %v1481
      %1511 = vmatpush1.msra.mxu0 %v1480
      %1512 = vmatprep.subr.mxu0 %v1473
      %1513 = vmatpush1.msra.mxu0 %v1472
      %1514 = vmatprep.subr.mxu0 %v1465
      %1515 = vmatpush1.msra.mxu0 %v1464
      %1516 = vmatprep.subr.mxu0 %v1425
      %1517 = vmatpush1.msra.mxu0 %v1424
      %1518 = vmatprep.subr.mxu0 %v1457
      %1519 = vmatpush1.msra.mxu0 %v1456
      %1520 = vmatprep.subr.mxu0 %v1449
      %1521 = vmatpush1.msra.mxu0 %v1448
      %1522 = vmatprep.subr.mxu0 %v1441
      %1523 = vmatpush1.msra.mxu0 %v1440
      %1524 = vmatprep.subr.mxu0 %v1433
      %1525 = vmatpush1.msra.mxu0 %v1432
      %1526 = vmatprep.subr.mxu0 0.0
      %1527 = vmatpush2.msra.mxu0 0.0
      %1528 = vmatprep.subr.mxu0 0.0
      %1529 = vmatpush2.msra.mxu0 0.0
      %1530 = vmatprep.subr.mxu0 0.0
      %1531 = vmatpush2.msra.mxu0 0.0
      %1532 = vmatprep.subr.mxu0 0.0
      %1533 = vmatpush2.msra.mxu0 0.0
      %1534 = vmatprep.subr.mxu0 0.0
      %1535 = vmatpush2.msra.mxu0 0.0
      %1536 = vmatprep.subr.mxu0 0.0
      %1537 = vmatpush2.msra.mxu0 0.0
      %1538 = vmatprep.subr.mxu0 0.0
      %1539 = vmatpush2.msra.mxu0 0.0
      %1540 = vmatprep.subr.mxu0 0.0
      %1541 = vmatpush2.msra.mxu0 0.0
      %1542 = vmatprep.subr.mxu0 0.0
      %1543 = vmatpush2.msra.mxu0 0.0
      %1544 = vmatprep.subr.mxu0 0.0
      %1545 = vmatpush2.msra.mxu0 0.0
      %1546 = vmatprep.subr.mxu0 0.0
      %1547 = vmatpush2.msra.mxu0 0.0
      %1548 = vmatprep.subr.mxu0 0.0
      %1549 = vmatpush2.msra.mxu0 0.0
      %1550 = vmatprep.subr.mxu0 0.0
      %1551 = vmatpush2.msra.mxu0 0.0
      %1552 = vmatprep.subr.mxu0 0.0
      %1553 = vmatpush2.msra.mxu0 0.0
      %1554 = vmatprep.subr.mxu0 0.0
      %1555 = vmatpush2.msra.mxu0 0.0
      %1556 = vmatprep.subr.mxu0 0.0
      %1557 = vmatpush2.msra.mxu0 0.0
      %1558 = vmatprep.mubr.f32.mxu0 0.0
      %1559 = vmatmul.mubr.f32.gmra.mxu0 %v1492
      %v1560 = vpop.f32.mrf.mxu0
      %v1561 = vadd.f32 0.0, %v1560
      %v1562 = vpop.f32.mrf.mxu0
      %v1563 = vadd.f32 0.0, %v1562
      %1564 = vdwg.mxu0
      %v1565 = vmax.f32 %v1561, 0.0
      %v1566 = vmax.f32 %v1563, 0.0
      %1567 = vrot.lane.b32.xlu0 %v612, 17
      %v1568 = vpop.permute.xlu0 %1567
      %1569 = vrot.lane.b32.xlu0 %v613, 17
      %v1570 = vpop.permute.xlu0 %1569
      %v1571 = vsel %vm316, %v1568, %v1570
      %v1572 = vsel %vm316, %v1570, %v1568
      %v1573 = vmul.f32 %v1572, %v325
      %v1574 = vmul.f32 %v1571, %v329
      %1575 = vrot.lane.b32.xlu0 %v612, 16
      %v1576 = vpop.permute.xlu0 %1575
      %1577 = vrot.lane.b32.xlu0 %v613, 16
      %v1578 = vpop.permute.xlu0 %1577
      %v1579 = vsel %vm338, %v1576, %v1578
      %v1580 = vsel %vm338, %v1578, %v1576
      %v1581 = vmul.f32 %v1580, %v347
      %v1582 = vmul.f32 %v1579, %v351
      %1583 = vrot.lane.b32.xlu0 %v612, 15
      %v1584 = vpop.permute.xlu0 %1583
      %1585 = vrot.lane.b32.xlu0 %v613, 15
      %v1586 = vpop.permute.xlu0 %1585
      %v1587 = vsel %vm360, %v1584, %v1586
      %v1588 = vsel %vm360, %v1586, %v1584
      %v1589 = vmul.f32 %v1588, %v369
      %v1590 = vmul.f32 %v1587, %v373
      %1591 = vrot.lane.b32.xlu0 %v612, 1
      %v1592 = vpop.permute.xlu0 %1591
      %1593 = vrot.lane.b32.xlu0 %v613, 1
      %v1594 = vpop.permute.xlu0 %1593
      %v1595 = vsel %vm382, %v1592, %v1594
      %v1596 = vsel %vm382, %v1594, %v1592
      %v1597 = vmul.f32 %v1596, %v391
      %v1598 = vmul.f32 %v1595, %v395
      %1599 = vrot.lane.b32.xlu0 %v612, 127
      %v1600 = vpop.permute.xlu0 %1599
      %1601 = vrot.lane.b32.xlu0 %v613, 127
      %v1602 = vpop.permute.xlu0 %1601
      %v1603 = vsel %vm404, %v1600, %v1602
      %v1604 = vsel %vm404, %v1602, %v1600
      %v1605 = vmul.f32 %v1603, %v413
      %v1606 = vmul.f32 %v1604, %v417
      %1607 = vrot.lane.b32.xlu0 %v612, 113
      %v1608 = vpop.permute.xlu0 %1607
      %1609 = vrot.lane.b32.xlu0 %v613, 113
      %v1610 = vpop.permute.xlu0 %1609
      %v1611 = vsel %vm426, %v1608, %v1610
      %v1612 = vsel %vm426, %v1610, %v1608
      %v1613 = vmul.f32 %v1611, %v435
      %v1614 = vmul.f32 %v1612, %v439
      %1615 = vrot.lane.b32.xlu0 %v612, 112
      %v1616 = vpop.permute.xlu0 %1615
      %1617 = vrot.lane.b32.xlu0 %v613, 112
      %v1618 = vpop.permute.xlu0 %1617
      %v1619 = vsel %vm448, %v1616, %v1618
      %v1620 = vsel %vm448, %v1618, %v1616
      %v1621 = vmul.f32 %v1619, %v457
      %v1622 = vmul.f32 %v1620, %v461
      %1623 = vrot.lane.b32.xlu0 %v612, 111
      %v1624 = vpop.permute.xlu0 %1623
      %1625 = vrot.lane.b32.xlu0 %v613, 111
      %v1626 = vpop.permute.xlu0 %1625
      %v1627 = vsel %vm470, %v1624, %v1626
      %v1628 = vsel %vm470, %v1626, %v1624
      %v1629 = vmul.f32 %v1627, %v479
      %v1630 = vmul.f32 %v1628, %v483
      %v1631 = vld [vmem:[%s6] sm:$0xff]
      %v1633 = vsel %vm501, %v1631, 0
      %1635 = vmatprep.subr.mxu0 0.0
      %1636 = vmatpush1.msra.mxu0 0.0
      %1637 = vmatprep.subr.mxu0 0.0
      %1638 = vmatpush1.msra.mxu0 0.0
      %1639 = vmatprep.subr.mxu0 0.0
      %1640 = vmatpush1.msra.mxu0 0.0
      %1641 = vmatprep.subr.mxu0 0.0
      %1642 = vmatpush1.msra.mxu0 0.0
      %1643 = vmatprep.subr.mxu0 0.0
      %1644 = vmatpush1.msra.mxu0 0.0
      %1645 = vmatprep.subr.mxu0 0.0
      %1646 = vmatpush1.msra.mxu0 0.0
      %1647 = vmatprep.subr.mxu0 %v517
      %1648 = vmatpush1.msra.mxu0 %v515
      %1649 = vmatprep.subr.mxu0 %v1630
      %1650 = vmatpush1.msra.mxu0 %v1629
      %1651 = vmatprep.subr.mxu0 %v1622
      %1652 = vmatpush1.msra.mxu0 %v1621
      %1653 = vmatprep.subr.mxu0 %v1614
      %1654 = vmatpush1.msra.mxu0 %v1613
      %1655 = vmatprep.subr.mxu0 %v1606
      %1656 = vmatpush1.msra.mxu0 %v1605
      %1657 = vmatprep.subr.mxu0 %v613
      %1658 = vmatpush1.msra.mxu0 %v612
      %1659 = vmatprep.subr.mxu0 %v1598
      %1660 = vmatpush1.msra.mxu0 %v1597
      %1661 = vmatprep.subr.mxu0 %v1590
      %1662 = vmatpush1.msra.mxu0 %v1589
      %1663 = vmatprep.subr.mxu0 %v1582
      %1664 = vmatpush1.msra.mxu0 %v1581
      %1665 = vmatprep.subr.mxu0 %v1574
      %1666 = vmatpush1.msra.mxu0 %v1573
      %1667 = vmatprep.subr.mxu0 0.0
      %1668 = vmatpush2.msra.mxu0 0.0
      %1669 = vmatprep.subr.mxu0 0.0
      %1670 = vmatpush2.msra.mxu0 0.0
      %1671 = vmatprep.subr.mxu0 0.0
      %1672 = vmatpush2.msra.mxu0 0.0
      %1673 = vmatprep.subr.mxu0 0.0
      %1674 = vmatpush2.msra.mxu0 0.0
      %1675 = vmatprep.subr.mxu0 0.0
      %1676 = vmatpush2.msra.mxu0 0.0
      %1677 = vmatprep.subr.mxu0 0.0
      %1678 = vmatpush2.msra.mxu0 0.0
      %1679 = vmatprep.subr.mxu0 0.0
      %1680 = vmatpush2.msra.mxu0 0.0
      %1681 = vmatprep.subr.mxu0 0.0
      %1682 = vmatpush2.msra.mxu0 0.0
      %1683 = vmatprep.subr.mxu0 0.0
      %1684 = vmatpush2.msra.mxu0 0.0
      %1685 = vmatprep.subr.mxu0 0.0
      %1686 = vmatpush2.msra.mxu0 0.0
      %1687 = vmatprep.subr.mxu0 0.0
      %1688 = vmatpush2.msra.mxu0 0.0
      %1689 = vmatprep.subr.mxu0 0.0
      %1690 = vmatpush2.msra.mxu0 0.0
      %1691 = vmatprep.subr.mxu0 0.0
      %1692 = vmatpush2.msra.mxu0 0.0
      %1693 = vmatprep.subr.mxu0 0.0
      %1694 = vmatpush2.msra.mxu0 0.0
      %1695 = vmatprep.subr.mxu0 0.0
      %1696 = vmatpush2.msra.mxu0 0.0
      %1697 = vmatprep.subr.mxu0 0.0
      %1698 = vmatpush2.msra.mxu0 0.0
      %1699 = vmatprep.mubr.f32.mxu0 0.0
      %1700 = vmatmul.mubr.f32.gmra.mxu0 %v1633
      %v1701 = vpop.f32.mrf.mxu0
      %v1702 = vadd.f32 0.0, %v1701
      %v1703 = vpop.f32.mrf.mxu0
      %v1704 = vadd.f32 0.0, %v1703
      %1705 = vdwg.mxu0
      %v1706 = vmax.f32 %v1702, 0.0
      %v1707 = vmax.f32 %v1704, 0.0
      %v1708 = vld [vmem:[%s7] sm:$0xff]
      %vm1709 = vcmask 400384
      %v1711 = vsel %vm1709, %v1708, 0
      %1713 = vmatprep.subr.mxu0 0.0
      %1714 = vmatpush1.msra.mxu0 0.0
      %1715 = vmatprep.subr.mxu0 0.0
      %1716 = vmatpush1.msra.mxu0 0.0
      %1717 = vmatprep.subr.mxu0 0.0
      %1718 = vmatpush1.msra.mxu0 0.0
      %1719 = vmatprep.subr.mxu0 0.0
      %1720 = vmatpush1.msra.mxu0 0.0
      %1721 = vmatprep.subr.mxu0 0.0
      %1722 = vmatpush1.msra.mxu0 0.0
      %1723 = vmatprep.subr.mxu0 0.0
      %1724 = vmatpush1.msra.mxu0 0.0
      %1725 = vmatprep.subr.mxu0 0.0
      %1726 = vmatpush1.msra.mxu0 0.0
      %1727 = vmatprep.subr.mxu0 0.0
      %1728 = vmatpush1.msra.mxu0 0.0
      %1729 = vmatprep.subr.mxu0 0.0
      %1730 = vmatpush1.msra.mxu0 0.0
      %1731 = vmatprep.subr.mxu0 %v517
      %1732 = vmatpush1.msra.mxu0 %v515
      %1733 = vmatprep.subr.mxu0 %v615
      %1734 = vmatpush1.msra.mxu0 %v614
      %1735 = vmatprep.subr.mxu0 %v1707
      %1736 = vmatpush1.msra.mxu0 %v1706
      %1737 = vmatprep.subr.mxu0 %v1566
      %1738 = vmatpush1.msra.mxu0 %v1565
      %1739 = vmatprep.subr.mxu0 %v1423
      %1740 = vmatpush1.msra.mxu0 %v1422
      %1741 = vmatprep.subr.mxu0 %v1343
      %1742 = vmatpush1.msra.mxu0 %v1342
      %1743 = vmatprep.subr.mxu0 %v848
      %1744 = vmatpush1.msra.mxu0 %v847
      %1745 = vmatprep.subr.mxu0 0.0
      %1746 = vmatpush2.msra.mxu0 0.0
      %1747 = vmatprep.subr.mxu0 0.0
      %1748 = vmatpush2.msra.mxu0 0.0
      %1749 = vmatprep.subr.mxu0 0.0
      %1750 = vmatpush2.msra.mxu0 0.0
      %1751 = vmatprep.subr.mxu0 0.0
      %1752 = vmatpush2.msra.mxu0 0.0
      %1753 = vmatprep.subr.mxu0 0.0
      %1754 = vmatpush2.msra.mxu0 0.0
      %1755 = vmatprep.subr.mxu0 0.0
      %1756 = vmatpush2.msra.mxu0 0.0
      %1757 = vmatprep.subr.mxu0 0.0
      %1758 = vmatpush2.msra.mxu0 0.0
      %1759 = vmatprep.subr.mxu0 0.0
      %1760 = vmatpush2.msra.mxu0 0.0
      %1761 = vmatprep.subr.mxu0 0.0
      %1762 = vmatpush2.msra.mxu0 0.0
      %1763 = vmatprep.subr.mxu0 0.0
      %1764 = vmatpush2.msra.mxu0 0.0
      %1765 = vmatprep.subr.mxu0 0.0
      %1766 = vmatpush2.msra.mxu0 0.0
      %1767 = vmatprep.subr.mxu0 0.0
      %1768 = vmatpush2.msra.mxu0 0.0
      %1769 = vmatprep.subr.mxu0 0.0
      %1770 = vmatpush2.msra.mxu0 0.0
      %1771 = vmatprep.subr.mxu0 0.0
      %1772 = vmatpush2.msra.mxu0 0.0
      %1773 = vmatprep.subr.mxu0 0.0
      %1774 = vmatpush2.msra.mxu0 0.0
      %1775 = vmatprep.subr.mxu0 0.0
      %1776 = vmatpush2.msra.mxu0 0.0
      %1777 = vmatprep.mubr.f32.mxu0 0.0
      %1778 = vmatmul.mubr.f32.gmra.mxu0 %v1711
      %v1779 = vpop.f32.mrf.mxu0
      %v1780 = vadd.f32 0.0, %v1779
      %v1781 = vpop.f32.mrf.mxu0
      %v1782 = vadd.f32 0.0, %v1781
      %1783 = vdwg.mxu0
      %1784 = vst [vmem:[%s305] sm:$0xff] %v1780
      %1785 = vst [vmem:[%s305 + $0x8] sm:$0xff] %v1782
      %p1786 = scmp.lt.s32.totalorder %s19, 1
      %s1787 = scalar_select %p1786, %s19, 1
      %s1788 = smul.addr %s1787, 2
      %s1789 = smul.addr %s1788, 8
      %s1790 = scalar_lea.vmem %s8, %s1789
      // Predicated region
      $region53: #{qnns_forward.1} parent=51 // pred_check
        %p1791 = pneg %p210
      $region54: #{qnns_forward.1} parent=51 // pred_check_branch
        %1793 = sbr.rel (%p1791) target = $region56
      $region55: #{qnns_forward.1} parent=51 // pred_region
        _
      $region56: #{qnns_forward.1} parent=51 // pred_fallthru
        _
    $region52: #{qnns_forward.1} parent=5 // pred_fallthru
      _
    %p1794 = scmp.le.s32.totalorder 2, %s14
    // Predicated region
    $region57: #{qnns_forward.1} parent=5 // pred_check
      %p1795 = pneg %p1794
    $region58: #{qnns_forward.1} parent=5 // pred_check_branch
      %1797 = sbr.rel (%p1795) target = $region60
    $region59: #{qnns_forward.1} parent=5 // pred_region
      %s1798 = ssub.s32 %s14, 2
      // Predicated region
      $region61: #{qnns_forward.1} parent=59 // pred_check
        %p1799 = pneg %p216
      $region62: #{qnns_forward.1} parent=59 // pred_check_branch
        %1801 = sbr.rel (%p1799) target = $region64
      $region63: #{qnns_forward.1} parent=59 // pred_region
        %p1802 = scmp.lt.s32.totalorder %s20, 1
        %s1803 = scalar_select %p1802, %s20, 1
        %s1804 = smul.addr %s1803, 2
        %s1805 = smul.addr %s1804, 8
        %s1806 = scalar_lea.vmem %s8, %s1805
      $region64: #{qnns_forward.1} parent=59 // pred_fallthru
        _
    $region60: #{qnns_forward.1} parent=5 // pred_fallthru
      _
  $region6: #{qnns_forward.1} parent=0 // loop_footer
    %s18 = sadd.s32 1, %s14
  $region7: #{qnns_forward.1} parent=0 // loop_footer_branch
    %13 = sbr.rel target = $region3
  $region8: #{qnns_forward.1} parent=0 // loop_exit
    _

</llo_original>
